<compile_context>
chip_gen: v7x
topology: tpu7x:2x2x1
jax: 0.10.0
libtpu: 0.0.40
codegen_flags: <defaults>
</compile_context>

<pallas_src>
import jax
import jax.numpy as jnp
from jax.experimental import pallas as pl
from jax.experimental.pallas import tpu as pltpu

EPS = 1e-10
JITTER = 1e-6


# ---------------------------------------------------------------------------
# small helpers
# ---------------------------------------------------------------------------
def _round_up(x, m):
    return ((x + m - 1) // m) * m


def _pad2d(x, rows, cols):
    pr, pc = rows - x.shape[0], cols - x.shape[1]
    if pr == 0 and pc == 0:
        return x
    return jnp.pad(x, ((0, pr), (0, pc)))


_VMEM_LIMIT_CACHE = None


def _vmem_limit_bytes():
    # 64 MiB on 128-MiB-VMEM parts (v2..v6), 48 MiB otherwise (v7x has 64 MiB).
    global _VMEM_LIMIT_CACHE
    if _VMEM_LIMIT_CACHE is None:
        try:
            kind = jax.devices()[0].device_kind.lower()
        except Exception:
            kind = ""
        if any(tag in kind for tag in ("v2", "v3", "v4", "v5", "v6")):
            _VMEM_LIMIT_CACHE = 64 * 1024 * 1024
        else:
            _VMEM_LIMIT_CACHE = 48 * 1024 * 1024
    return _VMEM_LIMIT_CACHE


def _pick_block(n_padded, max_t, align=128):
    """Largest multiple of `align` that divides n_padded and is <= max(max_t, align)."""
    t = min(n_padded, max(align, (max_t // align) * align))
    while n_padded % t:
        t -= align
    return t


# ---------------------------------------------------------------------------
# Pallas kernel 1: symmetric RBF Gram matrix of X with the noise/jitter diagonal
# fused in.  Grid = (num_upper_triangle_block_pairs, 2):
#   p == 0: compute tile (bi, bj)  (exp evaluated once per pair), write it.
#   p == 1: write the transposed tile to (bj, bi)  (skipped for diagonal blocks).
# ---------------------------------------------------------------------------
def _rbf_sym_kernel(bi_ref, bj_ref, scal_ref, x1_ref, n1_ref, x2t_ref, n2_ref,
                    out_ref, tile_ref):
    t = pl.program_id(0)
    p = pl.program_id(1)
    bi = bi_ref[t]
    bj = bj_ref[t]

    @pl.when(p == 0)
    def _compute():
        # cross term on the MXU; log_scale / -0.5|x|^2 already folded into n1/n2.
        cross = jnp.dot(x1_ref[...], x2t_ref[...], preferred_element_type=jnp.float32)
        arg = cross + n1_ref[...] + n2_ref[...]
        k = jnp.exp(jnp.minimum(arg, scal_ref[0]))        # min == d2 >= 0 clamp

        @pl.when(bi == bj)
        def _diag_tile():
            r = jax.lax.broadcasted_iota(jnp.int32, k.shape, 0)
            c = jax.lax.broadcasted_iota(jnp.int32, k.shape, 1)
            out_ref[...] = k + jnp.where(r == c, scal_ref[1], 0.0)   # fused jitter

        @pl.when(bi != bj)
        def _offdiag_tile():
            out_ref[...] = k
            tile_ref[...] = k                              # keep for the mirror pass

    @pl.when((p == 1) & (bi != bj))
    def _mirror():
        out_ref[...] = tile_ref[...].T


def rbf_kxx_sigma(xs, log_scale, diag_add, tm_max=256):
    """Sigma = K(xs, xs) + diag_add * I for pre-scaled xs.  Returns (N, N) f32."""
    n, d = xs.shape
    npad = _round_up(n, 128)
    tm = _pick_block(npad, tm_max)
    nblk = npad // tm

    norm = jnp.sum(xs * xs, axis=1, keepdims=True)                    # (N, 1)
    n1half = _pad2d(log_scale[0] - 0.5 * norm, npad, 1)               # (Np, 1)
    n2half = _pad2d((-0.5 * norm).T, 1, npad)                         # (1, Np)
    xp = _pad2d(xs, npad, d)                                          # (Np, D)
    xt = xp.T                                                         # (D, Np)
    scal = jnp.stack([log_scale[0], diag_add]).astype(jnp.float32)    # SMEM scalars

    pairs = [(i, j) for i in range(nblk) for j in range(i, nblk)]
    bi_tbl = jnp.asarray([ij[0] for ij in pairs], jnp.int32)
    bj_tbl = jnp.asarray([ij[1] for ij in pairs], jnp.int32)
    npairs = len(pairs)

    k_full = pl.pallas_call(
        _rbf_sym_kernel,
        out_shape=jax.ShapeDtypeStruct((npad, npad), jnp.float32),
        grid_spec=pltpu.PrefetchScalarGridSpec(
            num_scalar_prefetch=2,
            grid=(npairs, 2),
            in_specs=[
                pl.BlockSpec(memory_space=pltpu.MemorySpace.SMEM),        # [log_scale, diag_add]
                pl.BlockSpec((tm, d), lambda t, p, bi, bj: (bi[t], 0)),   # X rows block
                pl.BlockSpec((tm, 1), lambda t, p, bi, bj: (bi[t], 0)),   # n1half block
                pl.BlockSpec((d, tm), lambda t, p, bi, bj: (0, bj[t])),   # X^T cols block
                pl.BlockSpec((1, tm), lambda t, p, bi, bj: (0, bj[t])),   # n2half block
            ],
            out_specs=pl.BlockSpec(
                (tm, tm),
                lambda t, p, bi, bj: (bi[t] * (1 - p) + bj[t] * p,
                                      bj[t] * (1 - p) + bi[t] * p)),
            scratch_shapes=[pltpu.VMEM((tm, tm), jnp.float32)],
        ),
        compiler_params=pltpu.CompilerParams(
            dimension_semantics=("parallel", "arbitrary"),
            vmem_limit_bytes=_vmem_limit_bytes()),
    )(bi_tbl, bj_tbl, scal, xp, n1half, xt, n2half)
    return k_full[:n, :n]           # no-op when Ntr % 128 == 0


# ---------------------------------------------------------------------------
# Pallas kernel 2: cross RBF kernel K(X, Xte), column-tiled, full-Ntr row blocks.
# Output keeps the 128-padded test-column layout (shared with gp_predict).
# ---------------------------------------------------------------------------
def _rbf_cross_kernel(scal_ref, x1_ref, n1_ref, x2t_ref, n2_ref, out_ref):
    cross = jnp.dot(x1_ref[...], x2t_ref[...], preferred_element_type=jnp.float32)
    out_ref[...] = jnp.exp(jnp.minimum(cross + n1_ref[...] + n2_ref[...], scal_ref[0]))


def rbf_cross(x1s, x2s, log_scale, tn_cap=2048):
    """K(x1s, x2s) with N2 padded to a multiple of 128.  Returns (N1, N2p) f32."""
    n1, d = x1s.shape
    n2 = x2s.shape[0]
    n2p = _round_up(n2, 128)

    # column tile: modest block footprint, >= 2 tiles when possible (v7x megacore)
    # TODO(synk): add a row-tiled fallback for extremely large Ntr (full-row blocks
    # assume Ntr*tn*4B fits comfortably in VMEM, true for any Cholesky-feasible GP).
    cap = max(128, min(tn_cap, (16 * 1024 * 1024) // (8 * max(n1, 1))))
    max_t = min(cap, n2p // 2) if n2p >= 256 else cap
    tn = _pick_block(n2p, max_t)

    n1half = log_scale[0] - 0.5 * jnp.sum(x1s * x1s, axis=1, keepdims=True)   # (N1, 1)
    x2t = _pad2d(x2s, n2p, d).T                                               # (D, N2p)
    n2half = _pad2d(-0.5 * jnp.sum(x2s * x2s, axis=1, keepdims=True).T, 1, n2p)

    return pl.pallas_call(
        _rbf_cross_kernel,
        out_shape=jax.ShapeDtypeStruct((n1, n2p), jnp.float32),
        grid=(n2p // tn,),
        in_specs=[
            pl.BlockSpec(memory_space=pltpu.MemorySpace.SMEM),   # log_scale (1,)
            pl.BlockSpec((n1, d), lambda j: (0, 0)),             # X rows (resident)
            pl.BlockSpec((n1, 1), lambda j: (0, 0)),             # n1half (resident)
            pl.BlockSpec((d, tn), lambda j: (0, j)),             # Xte^T column block
            pl.BlockSpec((1, tn), lambda j: (0, j)),             # n2half column block
        ],
        out_specs=pl.BlockSpec((n1, tn), lambda j: (0, j)),
        compiler_params=pltpu.CompilerParams(
            dimension_semantics=("parallel",),
            vmem_limit_bytes=_vmem_limit_bytes()),
    )(log_scale, x1s, n1half, x2t, n2half)


# ---------------------------------------------------------------------------
# Pallas kernel 3: GP predictive assembly (normalized), column-tiled.
#   mean (Yd, tn) = alpha^T @ kx_block ; ssum (1, tn) = sum_rows(LinvKx^2)
# Full-Ntr reduction in one invocation -> no accumulator, no zero row padding.
# ---------------------------------------------------------------------------
def _predict_kernel(alpha_t_ref, kx_ref, lk_ref, mean_ref, ssum_ref):
    mean_ref[...] = jnp.dot(alpha_t_ref[...], kx_ref[...],
                            preferred_element_type=jnp.float32)
    lk = lk_ref[...]
    ssum_ref[...] = jnp.sum(lk * lk, axis=0, keepdims=True)


def gp_predict(kx_p, alpha, linvkx_p, tn_cap=2048):
    """kx_p / linvkx_p: (Ntr, Nte_p), Nte_p % 128 == 0 (layout shared with rbf_cross,
    never sliced or re-padded).  Returns ((Yd, Nte_p), (1, Nte_p))."""
    ntr, ntep = kx_p.shape
    yd = alpha.shape[1]
    assert ntep % 128 == 0 and linvkx_p.shape == kx_p.shape

    cap = max(128, min(tn_cap, (24 * 1024 * 1024) // (16 * max(ntr, 1))))
    max_t = min(cap, ntep // 2) if ntep >= 256 else cap
    tn = _pick_block(ntep, max_t)
    alpha_t = alpha.T                                              # (Yd, Ntr)

    return pl.pallas_call(
        _predict_kernel,
        out_shape=(jax.ShapeDtypeStruct((yd, ntep), jnp.float32),
                   jax.ShapeDtypeStruct((1, ntep), jnp.float32)),
        grid=(ntep // tn,),
        in_specs=[
            pl.BlockSpec((yd, ntr), lambda j: (0, 0)),   # alpha^T (resident)
            pl.BlockSpec((ntr, tn), lambda j: (0, j)),   # kx column block
            pl.BlockSpec((ntr, tn), lambda j: (0, j)),   # LinvKx column block
        ],
        out_specs=(pl.BlockSpec((yd, tn), lambda j: (0, j)),
                   pl.BlockSpec((1, tn), lambda j: (0, j))),
        compiler_params=pltpu.CompilerParams(
            dimension_semantics=("parallel",),
            vmem_limit_bytes=_vmem_limit_bytes()),
    )(alpha_t, kx_p, linvkx_p)


# ---------------------------------------------------------------------------
# cigp module (JAX / Pallas reimplementation of the PyTorch forward pass)
# ---------------------------------------------------------------------------
class CigpPallas:
    def __init__(self, X, Y, normal_y_mode=0):
        X = X.astype(jnp.float32)
        Y = Y.astype(jnp.float32)
        self.Xmean = X.mean(0)
        self.Xstd = jnp.std(X, axis=0, ddof=1)          # torch.std is unbiased
        self.X = (X - self.Xmean) / (self.Xstd + EPS)
        if normal_y_mode == 0:
            self.Ymean = Y.mean()
            self.Ystd = jnp.std(Y, ddof=1)
        elif normal_y_mode == 1:
            self.Ymean = Y.mean(0)
            self.Ystd = jnp.std(Y, axis=0, ddof=1)
        self.Y = (Y - self.Ymean) / (self.Ystd + EPS)

        # deterministic parameter init (matches nn.Parameter init in __init__)
        self.log_beta = jnp.zeros((1,), jnp.float32)
        self.log_length_scale = jnp.zeros((X.shape[1],), jnp.float32)
        self.log_scale = jnp.zeros((1,), jnp.float32)

    def forward(self, Xte):
        Xte = Xte.astype(jnp.float32)
        nte = Xte.shape[0]
        Xte_n = (Xte - self.Xmean) / self.Xstd           # forward has no EPS (as PyTorch)

        inv_ls = (1.0 / jnp.exp(self.log_length_scale)).reshape(1, -1)
        scale = jnp.exp(self.log_scale)[0]               # == diag of RBF K(x, x)
        inv_beta = jnp.exp(-self.log_beta)[0]

        # lengthscale scaling hoisted: done once, not per kernel tile
        Xs = self.X * inv_ls
        Xte_s = Xte_n * inv_ls

        # Sigma = K(X,X) + (1/beta + jitter) I, jitter diagonal fused in-kernel,
        # exp evaluated only on upper-triangle tile pairs (mirrored writes).
        Sigma = rbf_kxx_sigma(Xs, self.log_scale, inv_beta + JITTER)     # (Ntr, Ntr)

        # kx keeps its 128-padded test-column layout all the way to gp_predict.
        kx_p = rbf_cross(Xs, Xte_s, self.log_scale)                      # (Ntr, Nte_p)

        # TODO(synk): Cholesky / triangular solves stay in plain JAX (no clean Pallas equivalent).
        L = jnp.linalg.cholesky(Sigma)
        LinvKx_p = jax.scipy.linalg.solve_triangular(L, kx_p, lower=True)
        alpha = jax.scipy.linalg.cho_solve((L, True), self.Y)            # Sigma^-1 @ Y

        mean_row, ssum_row = gp_predict(kx_p, alpha, LinvKx_p)           # (Yd,Nte_p),(1,Nte_p)

        mean_n = mean_row[:, :nte].T                                     # (Nte, Yd)
        var_n = (scale - ssum_row[:, :nte] + inv_beta).T                 # (Nte, 1)

        # de-normalization in the wrapper: correct for scalar (mode 0) and
        # per-output-dim vector (mode 1) Ymean/Ystd alike.
        mean = mean_n * self.Ystd + self.Ymean
        var = jnp.broadcast_to(var_n, mean.shape) * self.Ystd ** 2
        return mean, var                                                 # (Nte, Yd) each


# ---------------------------------------------------------------------------
# reference (pure JAX) for correctness checking — mirrors the PyTorch forward
# ---------------------------------------------------------------------------
def _reference_forward(model, Xte):
    Xte_n = (Xte - model.Xmean) / model.Xstd
    ls = jnp.exp(model.log_length_scale)

    def kern(a, b):
        a = a / ls
        b = b / ls
        d2 = (-2.0 * a @ b.T
              + jnp.sum(a * a, 1, keepdims=True)
              + jnp.sum(b * b, 1, keepdims=True).T)
        return jnp.exp(model.log_scale[0]) * jnp.exp(-0.5 * d2)

    inv_beta = jnp.exp(-model.log_beta)[0]
    n = model.X.shape[0]
    Sigma = kern(model.X, model.X) + (inv_beta + JITTER) * jnp.eye(n)
    kx = kern(model.X, Xte_n)
    L = jnp.linalg.cholesky(Sigma)
    LinvKx = jax.scipy.linalg.solve_triangular(L, kx, lower=True)
    mean = kx.T @ jax.scipy.linalg.cho_solve((L, True), model.Y)
    var = (jnp.diagonal(kern(Xte_n, Xte_n)).reshape(-1, 1)
           - jnp.sum(LinvKx ** 2, 0).reshape(-1, 1) + inv_beta)
    mean = mean * model.Ystd + model.Ymean
    var = jnp.broadcast_to(var, mean.shape) * model.Ystd ** 2
    return mean, var


if __name__ == "__main__":
    jax.config.update("jax_default_matmul_precision", "highest")

    # --- small smoke test (single-tile grids, single symmetric block pair) ---
    k1, k2, k3 = jax.random.split(jax.random.PRNGKey(0), 3)
    Ntr, Nte, D, Yd = 24, 10, 6, 1
    X = jax.random.normal(k1, (Ntr, D), jnp.float32)
    Y = jax.random.normal(k2, (Ntr, Yd), jnp.float32)
    Xte = jax.random.normal(k3, (Nte, D), jnp.float32)

    model = CigpPallas(X, Y, normal_y_mode=0)
    mean, var = model.forward(Xte)
    jax.block_until_ready((mean, var))

    mean_ref, var_ref = _reference_forward(model, Xte)
    assert mean.shape == (Nte, Yd) and var.shape == (Nte, Yd)
    assert jnp.allclose(mean, mean_ref, atol=1e-3, rtol=1e-3)
    assert jnp.allclose(var, var_ref, atol=1e-3, rtol=1e-3)

    # --- multi-tile check: triangular block table (3x3 blocks), mirrored writes,
    #     fused diagonal, column padding shared between rbf_cross and gp_predict ---
    k4, k5, k6 = jax.random.split(jax.random.PRNGKey(1), 3)
    Ntr2, Nte2 = 300, 600
    X2 = jax.random.normal(k4, (Ntr2, D), jnp.float32)
    Y2 = jax.random.normal(k5, (Ntr2, Yd), jnp.float32)
    Xte2 = jax.random.normal(k6, (Nte2, D), jnp.float32)

    model2 = CigpPallas(X2, Y2, normal_y_mode=0)
    mean2, var2 = model2.forward(Xte2)
    jax.block_until_ready((mean2, var2))

    mean2_ref, var2_ref = _reference_forward(model2, Xte2)
    assert mean2.shape == (Nte2, Yd) and var2.shape == (Nte2, Yd)
    assert jnp.allclose(mean2, mean2_ref, atol=2e-3, rtol=2e-3)
    assert jnp.allclose(var2, var2_ref, atol=2e-3, rtol=2e-3)

    print("KERNEL_OK")
</pallas_src>

<mosaic_0001>
module attributes {stable_mosaic.version = 11 : i64} {
  func.func @_rbf_sym_kernel(%arg0: i32, %arg1: i32, %arg2: memref<1xi32, #tpu.memory_space<smem>>, %arg3: memref<1xi32, #tpu.memory_space<smem>>, %arg4: memref<2xf32, #tpu.memory_space<smem>>, %arg5: memref<128x6xf32, #tpu.memory_space<vmem>>, %arg6: memref<128x1xf32, #tpu.memory_space<vmem>>, %arg7: memref<6x128xf32, #tpu.memory_space<vmem>>, %arg8: memref<1x128xf32, #tpu.memory_space<vmem>>, %arg9: memref<128x128xf32, #tpu.memory_space<vmem>>, %arg10: memref<128x128xf32, #tpu.memory_space<vmem>>) attributes {dimension_semantics = [#tpu.dimension_semantics<parallel>, #tpu.dimension_semantics<arbitrary>], iteration_bounds = array<i64: 1, 2>, scalar_prefetch = 2 : i64, scratch_operands = 1 : i64, tpu.core_type = #tpu.core_type<tc>, window_params = [{transform_indices = @transform_0, window_bounds = array<i64: 2>}, {transform_indices = @transform_1, window_bounds = array<i64: 128, 6>}, {transform_indices = @transform_2, window_bounds = array<i64: 128, 1>}, {transform_indices = @transform_3, window_bounds = array<i64: 6, 128>}, {transform_indices = @transform_4, window_bounds = array<i64: 1, 128>}, {transform_indices = @transform_5, window_bounds = array<i64: 128, 128>}]} {
    %0 = arith.index_cast %arg0 : i32 to index
    %1 = memref.load %arg2[%0] : memref<1xi32, #tpu.memory_space<smem>>
    %2 = arith.index_cast %arg0 : i32 to index
    %3 = memref.load %arg3[%2] : memref<1xi32, #tpu.memory_space<smem>>
    %c0_i32 = arith.constant 0 : i32
    %4 = arith.cmpi eq, %arg1, %c0_i32 : i32
    %5 = arith.extui %4 : i1 to i32
    %c0_i32_0 = arith.constant 0 : i32
    %6 = arith.cmpi ne, %5, %c0_i32_0 : i32
    scf.if %6 {
      %c0 = arith.constant 0 : index
      %c0_2 = arith.constant 0 : index
      %12 = vector.load %arg5[%c0, %c0_2] : memref<128x6xf32, #tpu.memory_space<vmem>>, vector<128x6xf32>
      %c0_3 = arith.constant 0 : index
      %c0_4 = arith.constant 0 : index
      %13 = vector.load %arg7[%c0_3, %c0_4] : memref<6x128xf32, #tpu.memory_space<vmem>>, vector<6x128xf32>
      %cst = arith.constant dense<0.000000e+00> : vector<128x128xf32>
      %14 = tpu.matmul %12, %13, %cst {dimension_numbers = #tpu.dot_dimension_numbers<[1], [0], [0], [1], [0, 0, 1, 1], [], []>, precision = #tpu.contract_precision<fp32>} : vector<128x6xf32>, vector<6x128xf32>, vector<128x128xf32> -> vector<128x128xf32>
      %c0_5 = arith.constant 0 : index
      %c0_6 = arith.constant 0 : index
      %15 = vector.load %arg6[%c0_5, %c0_6] : memref<128x1xf32, #tpu.memory_space<vmem>>, vector<128x1xf32>
      %16 = vector.broadcast %15 : vector<128x1xf32> to vector<128x128xf32>
      %17 = arith.addf %14, %16 : vector<128x128xf32>
      %c0_7 = arith.constant 0 : index
      %c0_8 = arith.constant 0 : index
      %18 = vector.load %arg8[%c0_7, %c0_8] : memref<1x128xf32, #tpu.memory_space<vmem>>, vector<1x128xf32>
      %19 = vector.broadcast %18 : vector<1x128xf32> to vector<128x128xf32>
      %20 = arith.addf %17, %19 : vector<128x128xf32>
      %c0_9 = arith.constant 0 : index
      %21 = memref.load %arg4[%c0_9] : memref<2xf32, #tpu.memory_space<smem>>
      %22 = vector.broadcast %21 : f32 to vector<128x128xf32>
      %23 = arith.minimumf %20, %22 : vector<128x128xf32>
      %24 = math.exp %23 : vector<128x128xf32>
      %25 = arith.cmpi eq, %1, %3 : i32
      %26 = arith.extui %25 : i1 to i32
      %c0_i32_10 = arith.constant 0 : i32
      %27 = arith.cmpi ne, %26, %c0_i32_10 : i32
      scf.if %27 {
        %31 = tpu.iota {dimensions = array<i32: 0>} : vector<128x128xi32>
        %32 = tpu.iota {dimensions = array<i32: 1>} : vector<128x128xi32>
        %33 = arith.cmpi eq, %31, %32 : vector<128x128xi32>
        %c1 = arith.constant 1 : index
        %34 = memref.load %arg4[%c1] : memref<2xf32, #tpu.memory_space<smem>>
        %cst_12 = arith.constant 0.000000e+00 : f32
        %35 = vector.broadcast %34 : f32 to vector<128x128xf32>
        %36 = vector.broadcast %cst_12 : f32 to vector<128x128xf32>
        %37 = arith.select %33, %35, %36 : vector<128x128xi1>, vector<128x128xf32>
        %38 = arith.addf %24, %37 : vector<128x128xf32>
        %c0_13 = arith.constant 0 : index
        %c0_14 = arith.constant 0 : index
        %39 = vector.load %arg9[%c0_13, %c0_14] : memref<128x128xf32, #tpu.memory_space<vmem>>, vector<128x128xf32>
        tpu.vector_store %arg9[%c0_13, %c0_14], %38 {strides = array<i32>} : memref<128x128xf32, #tpu.memory_space<vmem>>, vector<128x128xf32>,
      } else {
      }
      %28 = arith.cmpi ne, %1, %3 : i32
      %29 = arith.extui %28 : i1 to i32
      %c0_i32_11 = arith.constant 0 : i32
      %30 = arith.cmpi ne, %29, %c0_i32_11 : i32
      scf.if %30 {
        %c0_12 = arith.constant 0 : index
        %c0_13 = arith.constant 0 : index
        %31 = vector.load %arg9[%c0_12, %c0_13] : memref<128x128xf32, #tpu.memory_space<vmem>>, vector<128x128xf32>
        tpu.vector_store %arg9[%c0_12, %c0_13], %24 {strides = array<i32>} : memref<128x128xf32, #tpu.memory_space<vmem>>, vector<128x128xf32>,
        %c0_14 = arith.constant 0 : index
        %c0_15 = arith.constant 0 : index
        %32 = vector.load %arg10[%c0_14, %c0_15] : memref<128x128xf32, #tpu.memory_space<vmem>>, vector<128x128xf32>
        tpu.vector_store %arg10[%c0_14, %c0_15], %24 {strides = array<i32>} : memref<128x128xf32, #tpu.memory_space<vmem>>, vector<128x128xf32>,
      } else {
      }
    } else {
    }
    %c1_i32 = arith.constant 1 : i32
    %7 = arith.cmpi eq, %arg1, %c1_i32 : i32
    %8 = arith.cmpi ne, %1, %3 : i32
    %9 = arith.andi %7, %8 : i1
    %10 = arith.extui %9 : i1 to i32
    %c0_i32_1 = arith.constant 0 : i32
    %11 = arith.cmpi ne, %10, %c0_i32_1 : i32
    scf.if %11 {
      %c0 = arith.constant 0 : index
      %c0_2 = arith.constant 0 : index
      %12 = vector.load %arg10[%c0, %c0_2] : memref<128x128xf32, #tpu.memory_space<vmem>>, vector<128x128xf32>
      %13 = tpu.transpose %12, [1, 0] : vector<128x128xf32> -> vector<128x128xf32>
      %c0_3 = arith.constant 0 : index
      %c0_4 = arith.constant 0 : index
      %14 = vector.load %arg9[%c0_3, %c0_4] : memref<128x128xf32, #tpu.memory_space<vmem>>, vector<128x128xf32>
      tpu.vector_store %arg9[%c0_3, %c0_4], %13 {strides = array<i32>} : memref<128x128xf32, #tpu.memory_space<vmem>>, vector<128x128xf32>,
    } else {
    }
    return
  }
  func.func @transform_0(%arg0: i32, %arg1: i32, %arg2: memref<1xi32, #tpu.memory_space<smem>>, %arg3: memref<1xi32, #tpu.memory_space<smem>>) -> i32 {
    %c0_i32 = arith.constant 0 : i32
    %c0_i32_0 = arith.constant 0 : i32
    return %c0_i32 : i32
  }
  func.func @transform_1(%arg0: i32, %arg1: i32, %arg2: memref<1xi32, #tpu.memory_space<smem>>, %arg3: memref<1xi32, #tpu.memory_space<smem>>) -> (i32, i32) {
    %0 = arith.index_cast %arg0 : i32 to index
    %1 = memref.load %arg2[%0] : memref<1xi32, #tpu.memory_space<smem>>
    %c0_i32 = arith.constant 0 : i32
    %c0_i32_0 = arith.constant 0 : i32
    return %1, %c0_i32 : i32, i32
  }
  func.func @transform_2(%arg0: i32, %arg1: i32, %arg2: memref<1xi32, #tpu.memory_space<smem>>, %arg3: memref<1xi32, #tpu.memory_space<smem>>) -> (i32, i32) {
    %0 = arith.index_cast %arg0 : i32 to index
    %1 = memref.load %arg2[%0] : memref<1xi32, #tpu.memory_space<smem>>
    %c0_i32 = arith.constant 0 : i32
    %c0_i32_0 = arith.constant 0 : i32
    return %1, %c0_i32 : i32, i32
  }
  func.func @transform_3(%arg0: i32, %arg1: i32, %arg2: memref<1xi32, #tpu.memory_space<smem>>, %arg3: memref<1xi32, #tpu.memory_space<smem>>) -> (i32, i32) {
    %0 = arith.index_cast %arg0 : i32 to index
    %1 = memref.load %arg3[%0] : memref<1xi32, #tpu.memory_space<smem>>
    %c0_i32 = arith.constant 0 : i32
    %c0_i32_0 = arith.constant 0 : i32
    return %c0_i32, %1 : i32, i32
  }
  func.func @transform_4(%arg0: i32, %arg1: i32, %arg2: memref<1xi32, #tpu.memory_space<smem>>, %arg3: memref<1xi32, #tpu.memory_space<smem>>) -> (i32, i32) {
    %0 = arith.index_cast %arg0 : i32 to index
    %1 = memref.load %arg3[%0] : memref<1xi32, #tpu.memory_space<smem>>
    %c0_i32 = arith.constant 0 : i32
    %c0_i32_0 = arith.constant 0 : i32
    return %c0_i32, %1 : i32, i32
  }
  func.func @transform_5(%arg0: i32, %arg1: i32, %arg2: memref<1xi32, #tpu.memory_space<smem>>, %arg3: memref<1xi32, #tpu.memory_space<smem>>) -> (i32, i32) {
    %0 = arith.index_cast %arg0 : i32 to index
    %1 = memref.load %arg2[%0] : memref<1xi32, #tpu.memory_space<smem>>
    %c1_i32 = arith.constant 1 : i32
    %2 = arith.subi %c1_i32, %arg1 : i32
    %3 = arith.muli %1, %2 : i32
    %4 = arith.index_cast %arg0 : i32 to index
    %5 = memref.load %arg3[%4] : memref<1xi32, #tpu.memory_space<smem>>
    %6 = arith.muli %5, %arg1 : i32
    %7 = arith.addi %3, %6 : i32
    %8 = arith.index_cast %arg0 : i32 to index
    %9 = memref.load %arg3[%8] : memref<1xi32, #tpu.memory_space<smem>>
    %c1_i32_0 = arith.constant 1 : i32
    %10 = arith.subi %c1_i32_0, %arg1 : i32
    %11 = arith.muli %9, %10 : i32
    %12 = arith.index_cast %arg0 : i32 to index
    %13 = memref.load %arg2[%12] : memref<1xi32, #tpu.memory_space<smem>>
    %14 = arith.muli %13, %arg1 : i32
    %15 = arith.addi %11, %14 : i32
    %c0_i32 = arith.constant 0 : i32
    return %7, %15 : i32, i32
  }
}

</mosaic_0001>

<llo_original>
// kernel: tpu_custom_call.1
$region0: #{tpu_custom_call.1}
  #allocation0 [shape = 'u32[]', space=smem, size = 0x4, offset = 0x4, fixed_abs, tag = 'smem constant byte address 0x4 - core index']
  #allocation1 [shape = 'u32[144,128]{1,0:T(1,128)}', space=vmem, size = 0x12000, scoped, tag = 'internal scratch']
  #allocation2 [shape = 'f32[128,128]{1,0:T(8,128)}', space=vmem, size = 0x10000, scoped, tag = 'scratch operand']
  #allocation3 [shape = 's32[1]{0}', space=sflag, size = 0x4, scoped, tag = 'scoped memory for tpu_custom_call.1']
  #allocation4 [shape = 's32[1]{0:T(128)S(6)}', space=smem, size = 0x200, scoped, tag = 'prefetched SMEM operand 0']
  #allocation5 [shape = 's32[1]{0:T(128)S(6)}', space=smem, size = 0x200, scoped, tag = 'prefetched SMEM operand 1']
  %s0 = inlined_call_operand.<no memory space> [shape: s32[1], index: 0, kind: input, shape index: {}]
  %s1 = inlined_call_operand.<no memory space> [shape: s32[1], index: 1, kind: input, shape index: {}]
  %s2 = inlined_call_operand.vmem [shape: f32[2], index: 2, kind: input, shape index: {}]
  %s3 = inlined_call_operand.vmem [shape: f32[128,6], index: 3, kind: input, shape index: {}]
  %s4 = inlined_call_operand.vmem [shape: f32[128,1], index: 4, kind: input, shape index: {}]
  %s5 = inlined_call_operand.vmem [shape: f32[6,128], index: 5, kind: input, shape index: {}]
  %s6 = inlined_call_operand.vmem [shape: f32[1,128], index: 6, kind: input, shape index: {}]
  %s7 = inlined_call_operand.hbm [shape: f32[128,128], index: 7, kind: output, shape index: {}]
  %s8 = sld [smem:[#allocation0]]
  $region73: #{tpu_custom_call.1} parent=0
    _
  %s10 = ssub.s32 1, %s8
  %s11 = scalar_select 0, %s10, %s8
  %12 = sst [smem:[#allocation4]] %s0
  %13 = sst [smem:[#allocation5]] %s1
  $region1: #{tpu_custom_call.1} parent=0
    #allocation6 [shape = 'u8[512]{0}', space=smem, size = 0x200, scoped, tag = 'input window, operand 2, single buffered']
    #allocation7 [shape = 's32[2]{0}', space=sflag, size = 0x8, scoped, tag = 'scoped memory for tpu_custom_call.1']
    #allocation8 [shape = 's32[2]{0}', space=sflag, size = 0x8, scoped, tag = 'scoped memory for tpu_custom_call.1']
    #allocation9 [shape = 'u8[131072]{0}', space=vmem, size = 0x20000, scoped, tag = 'output window, operand 0']
    %14 = vsyncpa [#allocation8], 0
    %15 = vsyncpa [#allocation7], 0
    %s16 = scalar_lea.sflag [#allocation7], 1
    %17 = vsyncpa %s16, 0
    loop: start=0, step=1, limit=4
    $region2: #{tpu_custom_call.1} parent=1 // loop_pre_header
      _
    $region3: #{tpu_custom_call.1} parent=1 // loop_header
      %s19 = sphi 0, %s23
      %p20 = scmp.ge.s32.totalorder %s19, 4
      %s26 = sphi 0, %s38
      %s27 = sphi 0, %s34
      %s28 = sphi 0, %s26
      %s29 = sphi 0, %s27
      %s30 = sphi 0, %s28
      %s31 = sphi 0, %s29
      %s39 = sphi 0, %s39
      %s41 = sphi 0, %s39
      %s42 = sphi 0, %s41
      %s56 = sphi 0, %s42
      %s64 = sphi 0, %s66
      %s67 = sphi 0, %s64
      %s68 = sphi 0, %s67
      %s84 = sphi 0, %s68
      %s92 = sphi 0, %s94
      %s95 = sphi 0, %s92
      %s96 = sphi 0, %s95
      %s112 = sphi 0, %s96
      %s120 = sphi 0, %s122
      %s123 = sphi 0, %s120
      %s124 = sphi 0, %s123
      %s140 = sphi 0, %s124
      %s148 = sphi 0, %s150
      %s151 = sphi 0, %s148
      %s152 = sphi 0, %s151
      %s168 = sphi 0, %s152
      %s194 = sphi 0, %s196
      %s197 = sphi 0, %s194
      %s198 = sphi 0, %s197
      %s214 = sphi 0, %s198
    $region4: #{tpu_custom_call.1} parent=1 // loop_header_branch
      %22 = sbr.rel (%p20) target = $region8
    $region5: #{tpu_custom_call.1} parent=1 // loop_body
      %s24 = ssub.s32 %s19, 1
      %s25 = ssub.s32 %s19, 2
      %s32 = sadd.s32 1, %s27
      %p33 = scmp.ge.s32.totalorder %s32, 2
      %s34 = scalar_select %p33, 0, %s32
      %s35 = sadd.s32 1, %s26
      %s36 = scalar_select %p33, %s35, %s26
      %p37 = scmp.ge.s32.totalorder %s36, 1
      %s38 = scalar_select %p37, 0, %s36
      %s40 = sadd.s32 %s39, 1
      %p43 = scmp.eq.s32.totalorder %s19, 1
      %p44 = scmp.ne.s32.totalorder %s39, %s41
      %p45 = scmp.eq.s32.totalorder %s19, 0
      %p46 = por %p44, %p45
      %p47 = scmp.ne.s32.totalorder %s39, %s41
      %p48 = scmp.eq.s32.totalorder %s24, 1
      %p49 = por %p47, %p48
      %p50 = scmp.ne.s32.totalorder %s41, %s42
      %p51 = scmp.eq.s32.totalorder %s24, 0
      %p52 = por %p50, %p51
      %p53 = scmp.ne.s32.totalorder %s41, %s42
      %p54 = scmp.eq.s32.totalorder %s25, 1
      %p55 = por %p53, %p54
      %p57 = scmp.ne.s32.totalorder %s42, %s56
      %p58 = scmp.eq.s32.totalorder %s25, 0
      %p59 = por %p57, %p58
      %s60 = sld [smem:[#allocation4 + %s26]]
      %s61 = sld [smem:[#allocation4 + %s38]]
      %s62 = ssub.s32 %s60, %s61
      %p63 = scmp.eq.s32.totalorder %s62, 0
      %s65 = sadd.s32 %s64, 1
      %s66 = scalar_select %p63, %s64, %s65
      %p69 = pneg %p63
      %p70 = scmp.eq.s32.totalorder %s19, 1
      %p71 = por %p69, %p70
      %p72 = scmp.ne.s32.totalorder %s64, %s67
      %p73 = scmp.eq.s32.totalorder %s19, 0
      %p74 = por %p72, %p73
      %p75 = scmp.ne.s32.totalorder %s64, %s67
      %p76 = scmp.eq.s32.totalorder %s24, 1
      %p77 = por %p75, %p76
      %p78 = scmp.ne.s32.totalorder %s67, %s68
      %p79 = scmp.eq.s32.totalorder %s24, 0
      %p80 = por %p78, %p79
      %p81 = scmp.ne.s32.totalorder %s67, %s68
      %p82 = scmp.eq.s32.totalorder %s25, 1
      %p83 = por %p81, %p82
      %p85 = scmp.ne.s32.totalorder %s68, %s84
      %p86 = scmp.eq.s32.totalorder %s25, 0
      %p87 = por %p85, %p86
      %s88 = sld [smem:[#allocation4 + %s26]]
      %s89 = sld [smem:[#allocation4 + %s38]]
      %s90 = ssub.s32 %s88, %s89
      %p91 = scmp.eq.s32.totalorder %s90, 0
      %s93 = sadd.s32 %s92, 1
      %s94 = scalar_select %p91, %s92, %s93
      %p97 = pneg %p91
      %p98 = scmp.eq.s32.totalorder %s19, 1
      %p99 = por %p97, %p98
      %p100 = scmp.ne.s32.totalorder %s92, %s95
      %p101 = scmp.eq.s32.totalorder %s19, 0
      %p102 = por %p100, %p101
      %p103 = scmp.ne.s32.totalorder %s92, %s95
      %p104 = scmp.eq.s32.totalorder %s24, 1
      %p105 = por %p103, %p104
      %p106 = scmp.ne.s32.totalorder %s95, %s96
      %p107 = scmp.eq.s32.totalorder %s24, 0
      %p108 = por %p106, %p107
      %p109 = scmp.ne.s32.totalorder %s95, %s96
      %p110 = scmp.eq.s32.totalorder %s25, 1
      %p111 = por %p109, %p110
      %p113 = scmp.ne.s32.totalorder %s96, %s112
      %p114 = scmp.eq.s32.totalorder %s25, 0
      %p115 = por %p113, %p114
      %s116 = sld [smem:[#allocation5 + %s26]]
      %s117 = sld [smem:[#allocation5 + %s38]]
      %s118 = ssub.s32 %s116, %s117
      %p119 = scmp.eq.s32.totalorder %s118, 0
      %s121 = sadd.s32 %s120, 1
      %s122 = scalar_select %p119, %s120, %s121
      %p125 = pneg %p119
      %p126 = scmp.eq.s32.totalorder %s19, 1
      %p127 = por %p125, %p126
      %p128 = scmp.ne.s32.totalorder %s120, %s123
      %p129 = scmp.eq.s32.totalorder %s19, 0
      %p130 = por %p128, %p129
      %p131 = scmp.ne.s32.totalorder %s120, %s123
      %p132 = scmp.eq.s32.totalorder %s24, 1
      %p133 = por %p131, %p132
      %p134 = scmp.ne.s32.totalorder %s123, %s124
      %p135 = scmp.eq.s32.totalorder %s24, 0
      %p136 = por %p134, %p135
      %p137 = scmp.ne.s32.totalorder %s123, %s124
      %p138 = scmp.eq.s32.totalorder %s25, 1
      %p139 = por %p137, %p138
      %p141 = scmp.ne.s32.totalorder %s124, %s140
      %p142 = scmp.eq.s32.totalorder %s25, 0
      %p143 = por %p141, %p142
      %s144 = sld [smem:[#allocation5 + %s26]]
      %s145 = sld [smem:[#allocation5 + %s38]]
      %s146 = ssub.s32 %s144, %s145
      %p147 = scmp.eq.s32.totalorder %s146, 0
      %s149 = sadd.s32 %s148, 1
      %s150 = scalar_select %p147, %s148, %s149
      %p153 = pneg %p147
      %p154 = scmp.eq.s32.totalorder %s19, 1
      %p155 = por %p153, %p154
      %p156 = scmp.ne.s32.totalorder %s148, %s151
      %p157 = scmp.eq.s32.totalorder %s19, 0
      %p158 = por %p156, %p157
      %p159 = scmp.ne.s32.totalorder %s148, %s151
      %p160 = scmp.eq.s32.totalorder %s24, 1
      %p161 = por %p159, %p160
      %p162 = scmp.ne.s32.totalorder %s151, %s152
      %p163 = scmp.eq.s32.totalorder %s24, 0
      %p164 = por %p162, %p163
      %p165 = scmp.ne.s32.totalorder %s151, %s152
      %p166 = scmp.eq.s32.totalorder %s25, 1
      %p167 = por %p165, %p166
      %p169 = scmp.ne.s32.totalorder %s152, %s168
      %p170 = scmp.eq.s32.totalorder %s25, 0
      %p171 = por %p169, %p170
      %s172 = sld [smem:[#allocation4 + %s26]]
      %s173 = ssub.s32 1, %s27
      %s174 = smul.u32 %s172, %s173
      %s175 = sld [smem:[#allocation5 + %s26]]
      %s176 = smul.u32 %s175, %s27
      %s177 = sadd.s32 %s174, %s176
      %s178 = smul.u32 %s175, %s173
      %s179 = smul.u32 %s172, %s27
      %s180 = sadd.s32 %s178, %s179
      %s181 = sld [smem:[#allocation4 + %s38]]
      %s182 = ssub.s32 1, %s34
      %s183 = smul.u32 %s181, %s182
      %s184 = sld [smem:[#allocation5 + %s38]]
      %s185 = smul.u32 %s184, %s34
      %s186 = sadd.s32 %s183, %s185
      %s187 = smul.u32 %s184, %s182
      %s188 = smul.u32 %s181, %s34
      %s189 = sadd.s32 %s187, %s188
      %s190 = ssub.s32 %s177, %s186
      %s191 = ssub.s32 %s180, %s189
      %s192 = sor.u32 %s190, %s191
      %p193 = scmp.eq.s32.totalorder %s192, 0
      %s195 = sadd.s32 %s194, 1
      %s196 = scalar_select %p193, %s194, %s195
      %p199 = pneg %p193
      %p200 = scmp.eq.s32.totalorder %s19, 1
      %p201 = por %p199, %p200
      %p202 = scmp.ne.s32.totalorder %s194, %s197
      %p203 = scmp.eq.s32.totalorder %s19, 0
      %p204 = por %p202, %p203
      %p205 = scmp.ne.s32.totalorder %s194, %s197
      %p206 = scmp.eq.s32.totalorder %s24, 1
      %p207 = por %p205, %p206
      %p208 = scmp.ne.s32.totalorder %s197, %s198
      %p209 = scmp.eq.s32.totalorder %s24, 0
      %p210 = por %p208, %p209
      %p211 = scmp.ne.s32.totalorder %s197, %s198
      %p212 = scmp.eq.s32.totalorder %s25, 1
      %p213 = por %p211, %p212
      %p215 = scmp.ne.s32.totalorder %s198, %s214
      %p216 = scmp.eq.s32.totalorder %s25, 0
      %p217 = por %p215, %p216
      %p218 = scmp.le.s32.totalorder 1, %s19
      %p219 = scmp.lt.s32.totalorder %s19, 3
      %p220 = pnand %p218, %p219
      %p221 = pneg %p220
      // Predicated region
      $region9: #{tpu_custom_call.1} parent=5 // pred_check
        _
      $region10: #{tpu_custom_call.1} parent=5 // pred_check_branch
        %223 = sbr.rel (%p220) target = $region12
      $region11: #{tpu_custom_call.1} parent=5 // pred_region
        %s224 = ssub.s32 %s19, 1
        // Predicated region
        $region13: #{tpu_custom_call.1} parent=11 // pred_check
          %p225 = pneg %p52
        $region14: #{tpu_custom_call.1} parent=11 // pred_check_branch
          %227 = sbr.rel (%p225) target = $region16
        $region15: #{tpu_custom_call.1} parent=11 // pred_region
          %s229 = ssub.s32 16, 16
          %230 = vsyncadd [#allocation8], %s229
          %s232 = sshll.u32 %s2, 4
          %s233 = int_to_ptr.vmem [resolvable:$true] %s232
          %235 = dma.vmem_to_smem %s233, 16, [#allocation6], [#allocation8]
        $region16: #{tpu_custom_call.1} parent=11 // pred_fallthru
          _
        // Predicated region
        $region17: #{tpu_custom_call.1} parent=11 // pred_check
          %p236 = pneg %p80
        $region18: #{tpu_custom_call.1} parent=11 // pred_check_branch
          %238 = sbr.rel (%p236) target = $region20
        $region19: #{tpu_custom_call.1} parent=11 // pred_region
          %s239 = sld [smem:[#allocation4 + %s28]]
          %s240 = smul.u32 16, %s239
          %p241 = scmp.lt.s32.totalorder %s240, 15
          %s242 = scalar_select %p241, %s240, 15
          %s243 = smul.addr %s242, 8
          %s244 = scalar_lea.vmem %s3, %s243
          %s245 = sld [smem:[#allocation4 + %s28]]
          %s246 = smul.u32 16, %s245
        $region20: #{tpu_custom_call.1} parent=11 // pred_fallthru
          _
        // Predicated region
        $region21: #{tpu_custom_call.1} parent=11 // pred_check
          %p247 = pneg %p108
        $region22: #{tpu_custom_call.1} parent=11 // pred_check_branch
          %249 = sbr.rel (%p247) target = $region24
        $region23: #{tpu_custom_call.1} parent=11 // pred_region
          %s250 = sld [smem:[#allocation4 + %s28]]
          %s251 = smul.u32 16, %s250
          %p252 = scmp.lt.s32.totalorder %s251, 15
          %s253 = scalar_select %p252, %s251, 15
          %s254 = smul.addr %s253, 8
          %s255 = scalar_lea.vmem %s4, %s254
          %s256 = sld [smem:[#allocation4 + %s28]]
          %s257 = smul.u32 16, %s256
        $region24: #{tpu_custom_call.1} parent=11 // pred_fallthru
          _
        // Predicated region
        $region25: #{tpu_custom_call.1} parent=11 // pred_check
          %p258 = pneg %p136
        $region26: #{tpu_custom_call.1} parent=11 // pred_check_branch
          %260 = sbr.rel (%p258) target = $region28
        $region27: #{tpu_custom_call.1} parent=11 // pred_region
          %s261 = sld [smem:[#allocation5 + %s28]]
          %p262 = scmp.lt.s32.totalorder %s261, 0
          %s263 = scalar_select %p262, %s261, 0
          %s264 = smul.addr %s263, 8
          %s265 = scalar_lea.vmem %s5, %s264
          %s266 = sld [smem:[#allocation5 + %s28]]
        $region28: #{tpu_custom_call.1} parent=11 // pred_fallthru
          _
        // Predicated region
        $region29: #{tpu_custom_call.1} parent=11 // pred_check
          %p267 = pneg %p164
        $region30: #{tpu_custom_call.1} parent=11 // pred_check_branch
          %269 = sbr.rel (%p267) target = $region32
        $region31: #{tpu_custom_call.1} parent=11 // pred_region
          %s270 = sld [smem:[#allocation5 + %s28]]
          %p271 = scmp.lt.s32.totalorder %s270, 0
          %s272 = scalar_select %p271, %s270, 0
          %s273 = scalar_lea.vmem %s6, %s272
          %s274 = sld [smem:[#allocation5 + %s28]]
        $region32: #{tpu_custom_call.1} parent=11 // pred_fallthru
          _
      $region12: #{tpu_custom_call.1} parent=5 // pred_fallthru
        _
      %p275 = scmp.lt.s32.totalorder %s19, 2
      // Predicated region
      $region33: #{tpu_custom_call.1} parent=5 // pred_check
        %p276 = pneg %p275
      $region34: #{tpu_custom_call.1} parent=5 // pred_check_branch
        %278 = sbr.rel (%p276) target = $region36
      $region35: #{tpu_custom_call.1} parent=5 // pred_region
        _
      $region36: #{tpu_custom_call.1} parent=5 // pred_fallthru
        _
      %p279 = scmp.le.s32.totalorder 1, %s19
      %p280 = scmp.lt.s32.totalorder %s19, 3
      %p281 = pnand %p279, %p280
      %p282 = pneg %p281
      // Predicated region
      $region37: #{tpu_custom_call.1} parent=5 // pred_check
        _
      $region38: #{tpu_custom_call.1} parent=5 // pred_check_branch
        %284 = sbr.rel (%p281) target = $region40
      $region39: #{tpu_custom_call.1} parent=5 // pred_region
        %s285 = ssub.s32 %s19, 1
        // Predicated region
        $region41: #{tpu_custom_call.1} parent=39 // pred_check
          %p286 = pneg %p52
        $region42: #{tpu_custom_call.1} parent=39 // pred_check_branch
          %288 = sbr.rel (%p286) target = $region44
        $region43: #{tpu_custom_call.1} parent=39 // pred_region
          %289 = dma.done [#allocation8], 16
        $region44: #{tpu_custom_call.1} parent=39 // pred_fallthru
          _
        %290 = sfence
        %p291 = pneg %p52
        %p292 = pneg %p49
        %s293 = sld [smem:[#allocation4 + %s28]]
        %s294 = smul.u32 16, %s293
        %p295 = scmp.lt.s32.totalorder %s294, 15
        %s296 = scalar_select %p295, %s294, 15
        %s297 = smul.addr %s296, 8
        %s298 = scalar_lea.vmem %s3, %s297
        %p299 = pneg %p80
        %p300 = pneg %p77
        %s301 = sld [smem:[#allocation4 + %s28]]
        %s302 = smul.u32 16, %s301
        %p303 = scmp.lt.s32.totalorder %s302, 15
        %s304 = scalar_select %p303, %s302, 15
        %s305 = smul.addr %s304, 8
        %s306 = scalar_lea.vmem %s4, %s305
        %p307 = pneg %p108
        %p308 = pneg %p105
        %s309 = sld [smem:[#allocation5 + %s28]]
        %p310 = scmp.lt.s32.totalorder %s309, 0
        %s311 = scalar_select %p310, %s309, 0
        %s312 = smul.addr %s311, 8
        %s313 = scalar_lea.vmem %s5, %s312
        %p314 = pneg %p136
        %p315 = pneg %p133
        %s316 = sld [smem:[#allocation5 + %s28]]
        %p317 = scmp.lt.s32.totalorder %s316, 0
        %s318 = scalar_select %p317, %s316, 0
        %s319 = scalar_lea.vmem %s6, %s318
        %p320 = pneg %p164
        %p321 = pneg %p161
        %p322 = pneg %p210
        %p323 = pneg %p207
        %s324 = sand.u32 %s197, 1
        %s325 = scalar_lea.sflag [#allocation7], %s324
        %s326 = sand.u32 %s197, 1
        %s327 = smul.addr %s326, 128
        %s328 = scalar_lea.vmem [#allocation9], %s327
        %s329 = sld [smem:[#allocation4 + %s28]]
        %s330 = smul.u32 16, %s329
        %p331 = scmp.lt.s32.totalorder %s330, 15
        %s332 = scalar_select %p331, %s330, 15
        %s333 = smul.addr %s332, 8
        %s334 = scalar_lea.vmem %s3, %s333
        %s335 = sld [smem:[#allocation4 + %s28]]
        %s336 = smul.u32 16, %s335
        %s337 = sld [smem:[#allocation4 + %s28]]
        %s338 = smul.u32 16, %s337
        %p339 = scmp.lt.s32.totalorder %s338, 15
        %s340 = scalar_select %p339, %s338, 15
        %s341 = smul.addr %s340, 8
        %s342 = scalar_lea.vmem %s4, %s341
        %s343 = sld [smem:[#allocation4 + %s28]]
        %s344 = smul.u32 16, %s343
        %s345 = sld [smem:[#allocation5 + %s28]]
        %p346 = scmp.lt.s32.totalorder %s345, 0
        %s347 = scalar_select %p346, %s345, 0
        %s348 = smul.addr %s347, 8
        %s349 = scalar_lea.vmem %s5, %s348
        %s350 = sld [smem:[#allocation5 + %s28]]
        %s351 = sld [smem:[#allocation5 + %s28]]
        %p352 = scmp.lt.s32.totalorder %s351, 0
        %s353 = scalar_select %p352, %s351, 0
        %s354 = scalar_lea.vmem %s6, %s353
        %s355 = sld [smem:[#allocation5 + %s28]]
        %s356 = sld [smem:[#allocation4 + %s28]]
        %s357 = ssub.s32 1, %s29
        %s358 = smul.u32 %s356, %s357
        %s359 = sld [smem:[#allocation5 + %s28]]
        %s360 = smul.u32 %s359, %s29
        %s361 = sadd.s32 %s358, %s360
        %s362 = smul.u32 %s359, %s357
        %s363 = smul.u32 %s356, %s29
        %s364 = sadd.s32 %s362, %s363
        %s365 = smul.u32 16, %s361
        %s366 = sld [smem:[#allocation4 + %s28]]
        %s367 = sld [smem:[#allocation5 + %s28]]
        %p368 = scmp.eq.s32.totalorder %s29, 0
        // Predicated region
        $region45: #{tpu_custom_call.1} parent=39 // pred_check
          %p369 = pneg %p368
        $region46: #{tpu_custom_call.1} parent=39 // pred_check_branch
          %371 = sbr.rel (%p369) target = $region48
        $region47: #{tpu_custom_call.1} parent=39 // pred_region
          %v372 = vld [vmem:[%s334] sm:$0xff]
          %v373 = vld [vmem:[%s334 + $0x8] sm:$0xff]
          %v374 = vld [vmem:[%s334 + $0x10] sm:$0xff]
          %v375 = vld [vmem:[%s334 + $0x18] sm:$0xff]
          %v376 = vld [vmem:[%s334 + $0x20] sm:$0xff]
          %v377 = vld [vmem:[%s334 + $0x28] sm:$0xff]
          %v378 = vld [vmem:[%s334 + $0x30] sm:$0xff]
          %v379 = vld [vmem:[%s334 + $0x38] sm:$0xff]
          %v380 = vld [vmem:[%s334 + $0x40] sm:$0xff]
          %v381 = vld [vmem:[%s334 + $0x48] sm:$0xff]
          %v382 = vld [vmem:[%s334 + $0x50] sm:$0xff]
          %v383 = vld [vmem:[%s334 + $0x58] sm:$0xff]
          %v384 = vld [vmem:[%s334 + $0x60] sm:$0xff]
          %v385 = vld [vmem:[%s334 + $0x68] sm:$0xff]
          %v386 = vld [vmem:[%s334 + $0x70] sm:$0xff]
          %v387 = vld [vmem:[%s334 + $0x78] sm:$0xff]
          %v388 = vld [vmem:[%s349] sm:$0x3f]
          %v389 = vld [vmem:[%s342] sm:$0xff]
          %v390 = vld [vmem:[%s342 + $0x8] sm:$0xff]
          %v391 = vld [vmem:[%s342 + $0x10] sm:$0xff]
          %v392 = vld [vmem:[%s342 + $0x18] sm:$0xff]
          %v393 = vld [vmem:[%s342 + $0x20] sm:$0xff]
          %v394 = vld [vmem:[%s342 + $0x28] sm:$0xff]
          %v395 = vld [vmem:[%s342 + $0x30] sm:$0xff]
          %v396 = vld [vmem:[%s342 + $0x38] sm:$0xff]
          %v397 = vld [vmem:[%s342 + $0x40] sm:$0xff]
          %v398 = vld [vmem:[%s342 + $0x48] sm:$0xff]
          %v399 = vld [vmem:[%s342 + $0x50] sm:$0xff]
          %v400 = vld [vmem:[%s342 + $0x58] sm:$0xff]
          %v401 = vld [vmem:[%s342 + $0x60] sm:$0xff]
          %v402 = vld [vmem:[%s342 + $0x68] sm:$0xff]
          %v403 = vld [vmem:[%s342 + $0x70] sm:$0xff]
          %v404 = vld [vmem:[%s342 + $0x78] sm:$0xff]
          %406 = vset.pattern.permute.xlu0 0
          %407 = vperm.xlu0 %406, %v389
          %v408 = vpop.permute.xlu0 %407
          %411 = vset.pattern.permute.xlu0 0
          %412 = vperm.xlu0 %411, %v390
          %v413 = vpop.permute.xlu0 %412
          %416 = vset.pattern.permute.xlu0 0
          %417 = vperm.xlu0 %416, %v391
          %v418 = vpop.permute.xlu0 %417
          %421 = vset.pattern.permute.xlu0 0
          %422 = vperm.xlu0 %421, %v392
          %v423 = vpop.permute.xlu0 %422
          %426 = vset.pattern.permute.xlu0 0
          %427 = vperm.xlu0 %426, %v393
          %v428 = vpop.permute.xlu0 %427
          %431 = vset.pattern.permute.xlu0 0
          %432 = vperm.xlu0 %431, %v394
          %v433 = vpop.permute.xlu0 %432
          %436 = vset.pattern.permute.xlu0 0
          %437 = vperm.xlu0 %436, %v395
          %v438 = vpop.permute.xlu0 %437
          %441 = vset.pattern.permute.xlu0 0
          %442 = vperm.xlu0 %441, %v396
          %v443 = vpop.permute.xlu0 %442
          %446 = vset.pattern.permute.xlu0 0
          %447 = vperm.xlu0 %446, %v397
          %v448 = vpop.permute.xlu0 %447
          %451 = vset.pattern.permute.xlu0 0
          %452 = vperm.xlu0 %451, %v398
          %v453 = vpop.permute.xlu0 %452
          %456 = vset.pattern.permute.xlu0 0
          %457 = vperm.xlu0 %456, %v399
          %v458 = vpop.permute.xlu0 %457
          %461 = vset.pattern.permute.xlu0 0
          %462 = vperm.xlu0 %461, %v400
          %v463 = vpop.permute.xlu0 %462
          %466 = vset.pattern.permute.xlu0 0
          %467 = vperm.xlu0 %466, %v401
          %v468 = vpop.permute.xlu0 %467
          %471 = vset.pattern.permute.xlu0 0
          %472 = vperm.xlu0 %471, %v402
          %v473 = vpop.permute.xlu0 %472
          %476 = vset.pattern.permute.xlu0 0
          %477 = vperm.xlu0 %476, %v403
          %v478 = vpop.permute.xlu0 %477
          %481 = vset.pattern.permute.xlu0 0
          %482 = vperm.xlu0 %481, %v404
          %v483 = vpop.permute.xlu0 %482
          %vm485 = vcmask 48128
          %v487 = vsel %vm485, %v372, 0
          %v490 = vsel %vm485, %v373, 0
          %v493 = vsel %vm485, %v374, 0
          %v496 = vsel %vm485, %v375, 0
          %v499 = vsel %vm485, %v376, 0
          %v502 = vsel %vm485, %v377, 0
          %v505 = vsel %vm485, %v378, 0
          %v508 = vsel %vm485, %v379, 0
          %v511 = vsel %vm485, %v380, 0
          %v514 = vsel %vm485, %v381, 0
          %v517 = vsel %vm485, %v382, 0
          %v520 = vsel %vm485, %v383, 0
          %v523 = vsel %vm485, %v384, 0
          %v526 = vsel %vm485, %v385, 0
          %v529 = vsel %vm485, %v386, 0
          %v532 = vsel %vm485, %v387, 0
          %vm534 = vcmask 1045504
          %v536 = vsel %vm534, %v388, 0
          %538 = vmatprep.subr.mxu0 0.0
          %v539 = vand.u32 %v536, 4294901760
          %540 = vmatpush1.msra.mxu0 %v539
          %541 = vmatprep.subr.mxu0 0.0
          %542 = vmatpush1.msra.mxu0 0.0
          %543 = vmatprep.subr.mxu0 0.0
          %544 = vmatpush1.msra.mxu0 0.0
          %545 = vmatprep.subr.mxu0 0.0
          %546 = vmatpush1.msra.mxu0 0.0
          %547 = vmatprep.subr.mxu0 0.0
          %548 = vmatpush1.msra.mxu0 0.0
          %549 = vmatprep.subr.mxu0 0.0
          %550 = vmatpush1.msra.mxu0 0.0
          %551 = vmatprep.subr.mxu0 0.0
          %552 = vmatpush1.msra.mxu0 0.0
          %553 = vmatprep.subr.mxu0 0.0
          %554 = vmatpush1.msra.mxu0 0.0
          %555 = vmatprep.subr.mxu0 0.0
          %556 = vmatpush1.msra.mxu0 0.0
          %557 = vmatprep.subr.mxu0 0.0
          %558 = vmatpush1.msra.mxu0 0.0
          %559 = vmatprep.subr.mxu0 0.0
          %560 = vmatpush1.msra.mxu0 0.0
          %561 = vmatprep.subr.mxu0 0.0
          %562 = vmatpush1.msra.mxu0 0.0
          %563 = vmatprep.subr.mxu0 0.0
          %564 = vmatpush1.msra.mxu0 0.0
          %565 = vmatprep.subr.mxu0 0.0
          %566 = vmatpush1.msra.mxu0 0.0
          %567 = vmatprep.subr.mxu0 0.0
          %568 = vmatpush1.msra.mxu0 0.0
          %569 = vmatprep.subr.mxu0 0.0
          %570 = vmatpush1.msra.mxu0 0.0
          %571 = vmatprep.subr.mxu0 0.0
          %572 = vmatpush1.msra.mxu0 0.0
          %573 = vmatprep.subr.mxu0 0.0
          %574 = vmatpush1.msra.mxu0 0.0
          %575 = vmatprep.subr.mxu0 0.0
          %576 = vmatpush1.msra.mxu0 0.0
          %577 = vmatprep.subr.mxu0 0.0
          %578 = vmatpush1.msra.mxu0 0.0
          %579 = vmatprep.subr.mxu0 0.0
          %580 = vmatpush1.msra.mxu0 0.0
          %581 = vmatprep.subr.mxu0 0.0
          %582 = vmatpush1.msra.mxu0 0.0
          %583 = vmatprep.subr.mxu0 0.0
          %584 = vmatpush1.msra.mxu0 0.0
          %585 = vmatprep.subr.mxu0 0.0
          %586 = vmatpush1.msra.mxu0 0.0
          %587 = vmatprep.subr.mxu0 0.0
          %588 = vmatpush1.msra.mxu0 0.0
          %589 = vmatprep.subr.mxu0 0.0
          %590 = vmatpush1.msra.mxu0 0.0
          %591 = vmatprep.subr.mxu0 0.0
          %592 = vmatpush1.msra.mxu0 0.0
          %593 = vmatprep.subr.mxu0 0.0
          %594 = vmatpush1.msra.mxu0 0.0
          %595 = vmatprep.subr.mxu0 0.0
          %596 = vmatpush1.msra.mxu0 0.0
          %597 = vmatprep.subr.mxu0 0.0
          %598 = vmatpush1.msra.mxu0 0.0
          %599 = vmatprep.subr.mxu0 0.0
          %600 = vmatpush1.msra.mxu0 0.0
          %601 = vmatprep.subr.mxu0 0.0
          %602 = vmatpush1.msra.mxu0 0.0
          %603 = vmatprep.mubr.f32.mxu0 0.0
          %v604 = vand.u32 %v487, 4294901760
          %v605 = vsub.f32 %v487, %v604
          %v606 = vand.u32 %v605, 4294901760
          %v607 = vsub.f32 %v605, %v606
          %v608 = vand.u32 %v607, 4294901760
          %609 = vmatmul.mubr.f32.gmra.mrb[0].mxu0 %v608
          %v610 = vpop.f32.mrb[0].mxu0
          %v611 = vadd.f32 %v408, %v610
          %v612 = vpop.f32.mrb[0].mxu0
          %613 = vmatprep.mubr.f32.mxu0 0.0
          %v614 = vand.u32 %v490, 4294901760
          %v615 = vsub.f32 %v490, %v614
          %v616 = vand.u32 %v615, 4294901760
          %v617 = vsub.f32 %v615, %v616
          %v618 = vand.u32 %v617, 4294901760
          %619 = vmatmul.mubr.f32.gmra.mrb[0].mxu0 %v618
          %v620 = vpop.f32.mrb[0].mxu0
          %v621 = vadd.f32 %v413, %v620
          %v622 = vpop.f32.mrb[0].mxu0
          %623 = vmatprep.mubr.f32.mxu0 0.0
          %v624 = vand.u32 %v493, 4294901760
          %v625 = vsub.f32 %v493, %v624
          %v626 = vand.u32 %v625, 4294901760
          %v627 = vsub.f32 %v625, %v626
          %v628 = vand.u32 %v627, 4294901760
          %629 = vmatmul.mubr.f32.gmra.mrb[0].mxu0 %v628
          %v630 = vpop.f32.mrb[0].mxu0
          %v631 = vadd.f32 %v418, %v630
          %v632 = vpop.f32.mrb[0].mxu0
          %633 = vmatprep.mubr.f32.mxu0 0.0
          %v634 = vand.u32 %v496, 4294901760
          %v635 = vsub.f32 %v496, %v634
          %v636 = vand.u32 %v635, 4294901760
          %v637 = vsub.f32 %v635, %v636
          %v638 = vand.u32 %v637, 4294901760
          %639 = vmatmul.mubr.f32.gmra.mrb[0].mxu0 %v638
          %v640 = vpop.f32.mrb[0].mxu0
          %v641 = vadd.f32 %v423, %v640
          %v642 = vpop.f32.mrb[0].mxu0
          %643 = vmatprep.mubr.f32.mxu0 0.0
          %v644 = vand.u32 %v499, 4294901760
          %v645 = vsub.f32 %v499, %v644
          %v646 = vand.u32 %v645, 4294901760
          %v647 = vsub.f32 %v645, %v646
          %v648 = vand.u32 %v647, 4294901760
          %649 = vmatmul.mubr.f32.gmra.mrb[0].mxu0 %v648
          %v650 = vpop.f32.mrb[0].mxu0
          %v651 = vadd.f32 %v428, %v650
          %v652 = vpop.f32.mrb[0].mxu0
          %653 = vmatprep.mubr.f32.mxu0 0.0
          %v654 = vand.u32 %v502, 4294901760
          %v655 = vsub.f32 %v502, %v654
          %v656 = vand.u32 %v655, 4294901760
          %v657 = vsub.f32 %v655, %v656
          %v658 = vand.u32 %v657, 4294901760
          %659 = vmatmul.mubr.f32.gmra.mrb[0].mxu0 %v658
          %v660 = vpop.f32.mrb[0].mxu0
          %v661 = vadd.f32 %v433, %v660
          %v662 = vpop.f32.mrb[0].mxu0
          %663 = vmatprep.mubr.f32.mxu0 0.0
          %v664 = vand.u32 %v505, 4294901760
          %v665 = vsub.f32 %v505, %v664
          %v666 = vand.u32 %v665, 4294901760
          %v667 = vsub.f32 %v665, %v666
          %v668 = vand.u32 %v667, 4294901760
          %669 = vmatmul.mubr.f32.gmra.mrb[0].mxu0 %v668
          %v670 = vpop.f32.mrb[0].mxu0
          %v671 = vadd.f32 %v438, %v670
          %v672 = vpop.f32.mrb[0].mxu0
          %673 = vmatprep.mubr.f32.mxu0 0.0
          %v674 = vand.u32 %v508, 4294901760
          %v675 = vsub.f32 %v508, %v674
          %v676 = vand.u32 %v675, 4294901760
          %v677 = vsub.f32 %v675, %v676
          %v678 = vand.u32 %v677, 4294901760
          %679 = vmatmul.mubr.f32.gmra.mrb[0].mxu0 %v678
          %v680 = vpop.f32.mrb[0].mxu0
          %v681 = vadd.f32 %v443, %v680
          %v682 = vpop.f32.mrb[0].mxu0
          %683 = vmatprep.mubr.f32.mxu0 0.0
          %v684 = vand.u32 %v511, 4294901760
          %v685 = vsub.f32 %v511, %v684
          %v686 = vand.u32 %v685, 4294901760
          %v687 = vsub.f32 %v685, %v686
          %v688 = vand.u32 %v687, 4294901760
          %689 = vmatmul.mubr.f32.gmra.mrb[0].mxu0 %v688
          %v690 = vpop.f32.mrb[0].mxu0
          %v691 = vadd.f32 %v448, %v690
          %v692 = vpop.f32.mrb[0].mxu0
          %693 = vmatprep.mubr.f32.mxu0 0.0
          %v694 = vand.u32 %v514, 4294901760
          %v695 = vsub.f32 %v514, %v694
          %v696 = vand.u32 %v695, 4294901760
          %v697 = vsub.f32 %v695, %v696
          %v698 = vand.u32 %v697, 4294901760
          %699 = vmatmul.mubr.f32.gmra.mrb[0].mxu0 %v698
          %v700 = vpop.f32.mrb[0].mxu0
          %v701 = vadd.f32 %v453, %v700
          %v702 = vpop.f32.mrb[0].mxu0
          %703 = vmatprep.mubr.f32.mxu0 0.0
          %v704 = vand.u32 %v517, 4294901760
          %v705 = vsub.f32 %v517, %v704
          %v706 = vand.u32 %v705, 4294901760
          %v707 = vsub.f32 %v705, %v706
          %v708 = vand.u32 %v707, 4294901760
          %709 = vmatmul.mubr.f32.gmra.mrb[0].mxu0 %v708
          %v710 = vpop.f32.mrb[0].mxu0
          %v711 = vadd.f32 %v458, %v710
          %v712 = vpop.f32.mrb[0].mxu0
          %713 = vmatprep.mubr.f32.mxu0 0.0
          %v714 = vand.u32 %v520, 4294901760
          %v715 = vsub.f32 %v520, %v714
          %v716 = vand.u32 %v715, 4294901760
          %v717 = vsub.f32 %v715, %v716
          %v718 = vand.u32 %v717, 4294901760
          %719 = vmatmul.mubr.f32.gmra.mrb[0].mxu0 %v718
          %v720 = vpop.f32.mrb[0].mxu0
          %v721 = vadd.f32 %v463, %v720
          %v722 = vpop.f32.mrb[0].mxu0
          %723 = vmatprep.mubr.f32.mxu0 0.0
          %v724 = vand.u32 %v523, 4294901760
          %v725 = vsub.f32 %v523, %v724
          %v726 = vand.u32 %v725, 4294901760
          %v727 = vsub.f32 %v725, %v726
          %v728 = vand.u32 %v727, 4294901760
          %729 = vmatmul.mubr.f32.gmra.mrb[0].mxu0 %v728
          %v730 = vpop.f32.mrb[0].mxu0
          %v731 = vadd.f32 %v468, %v730
          %v732 = vpop.f32.mrb[0].mxu0
          %733 = vmatprep.mubr.f32.mxu0 0.0
          %v734 = vand.u32 %v526, 4294901760
          %v735 = vsub.f32 %v526, %v734
          %v736 = vand.u32 %v735, 4294901760
          %v737 = vsub.f32 %v735, %v736
          %v738 = vand.u32 %v737, 4294901760
          %739 = vmatmul.mubr.f32.gmra.mrb[0].mxu0 %v738
          %v740 = vpop.f32.mrb[0].mxu0
          %v741 = vadd.f32 %v473, %v740
          %v742 = vpop.f32.mrb[0].mxu0
          %743 = vmatprep.mubr.f32.mxu0 0.0
          %v744 = vand.u32 %v529, 4294901760
          %v745 = vsub.f32 %v529, %v744
          %v746 = vand.u32 %v745, 4294901760
          %v747 = vsub.f32 %v745, %v746
          %v748 = vand.u32 %v747, 4294901760
          %749 = vmatmul.mubr.f32.gmra.mrb[0].mxu0 %v748
          %v750 = vpop.f32.mrb[0].mxu0
          %v751 = vadd.f32 %v478, %v750
          %v752 = vpop.f32.mrb[0].mxu0
          %753 = vmatprep.mubr.f32.mxu0 0.0
          %v754 = vand.u32 %v532, 4294901760
          %v755 = vsub.f32 %v532, %v754
          %v756 = vand.u32 %v755, 4294901760
          %v757 = vsub.f32 %v755, %v756
          %v758 = vand.u32 %v757, 4294901760
          %759 = vmatmul.mubr.f32.gmra.mrb[0].mxu0 %v758
          %v760 = vpop.f32.mrb[0].mxu0
          %v761 = vadd.f32 %v483, %v760
          %v762 = vpop.f32.mrb[0].mxu0
          %763 = vdwg.mxu0
          %764 = vmatprep.subr.mxu0 0.0
          %v765 = vand.u32 %v536, 4294901760
          %v766 = vsub.f32 %v536, %v765
          %v767 = vand.u32 %v766, 4294901760
          %v768 = vsub.f32 %v766, %v767
          %v769 = vand.u32 %v768, 4294901760
          %770 = vmatpush1.msra.mxu0 %v769
          %771 = vmatprep.subr.mxu0 0.0
          %772 = vmatpush1.msra.mxu0 0.0
          %773 = vmatprep.subr.mxu0 0.0
          %774 = vmatpush1.msra.mxu0 0.0
          %775 = vmatprep.subr.mxu0 0.0
          %776 = vmatpush1.msra.mxu0 0.0
          %777 = vmatprep.subr.mxu0 0.0
          %778 = vmatpush1.msra.mxu0 0.0
          %779 = vmatprep.subr.mxu0 0.0
          %780 = vmatpush1.msra.mxu0 0.0
          %781 = vmatprep.subr.mxu0 0.0
          %782 = vmatpush1.msra.mxu0 0.0
          %783 = vmatprep.subr.mxu0 0.0
          %784 = vmatpush1.msra.mxu0 0.0
          %785 = vmatprep.subr.mxu0 0.0
          %786 = vmatpush1.msra.mxu0 0.0
          %787 = vmatprep.subr.mxu0 0.0
          %788 = vmatpush1.msra.mxu0 0.0
          %789 = vmatprep.subr.mxu0 0.0
          %790 = vmatpush1.msra.mxu0 0.0
          %791 = vmatprep.subr.mxu0 0.0
          %792 = vmatpush1.msra.mxu0 0.0
          %793 = vmatprep.subr.mxu0 0.0
          %794 = vmatpush1.msra.mxu0 0.0
          %795 = vmatprep.subr.mxu0 0.0
          %796 = vmatpush1.msra.mxu0 0.0
          %797 = vmatprep.subr.mxu0 0.0
          %798 = vmatpush1.msra.mxu0 0.0
          %799 = vmatprep.subr.mxu0 0.0
          %800 = vmatpush1.msra.mxu0 0.0
          %801 = vmatprep.subr.mxu0 0.0
          %802 = vmatpush1.msra.mxu0 0.0
          %803 = vmatprep.subr.mxu0 0.0
          %804 = vmatpush1.msra.mxu0 0.0
          %805 = vmatprep.subr.mxu0 0.0
          %806 = vmatpush1.msra.mxu0 0.0
          %807 = vmatprep.subr.mxu0 0.0
          %808 = vmatpush1.msra.mxu0 0.0
          %809 = vmatprep.subr.mxu0 0.0
          %810 = vmatpush1.msra.mxu0 0.0
          %811 = vmatprep.subr.mxu0 0.0
          %812 = vmatpush1.msra.mxu0 0.0
          %813 = vmatprep.subr.mxu0 0.0
          %814 = vmatpush1.msra.mxu0 0.0
          %815 = vmatprep.subr.mxu0 0.0
          %816 = vmatpush1.msra.mxu0 0.0
          %817 = vmatprep.subr.mxu0 0.0
          %818 = vmatpush1.msra.mxu0 0.0
          %819 = vmatprep.subr.mxu0 0.0
          %820 = vmatpush1.msra.mxu0 0.0
          %821 = vmatprep.subr.mxu0 0.0
          %822 = vmatpush1.msra.mxu0 0.0
          %823 = vmatprep.subr.mxu0 0.0
          %824 = vmatpush1.msra.mxu0 0.0
          %825 = vmatprep.subr.mxu0 0.0
          %826 = vmatpush1.msra.mxu0 0.0
          %827 = vmatprep.subr.mxu0 0.0
          %828 = vmatpush1.msra.mxu0 0.0
          %829 = vmatprep.subr.mxu0 0.0
          %830 = vmatpush1.msra.mxu0 0.0
          %831 = vmatprep.subr.mxu0 0.0
          %832 = vmatpush1.msra.mxu0 0.0
          %833 = vmatprep.mubr.f32.mxu0 0.0
          %v834 = vand.u32 %v487, 4294901760
          %835 = vmatmul.mubr.f32.gmra.mrb[0].mxu0 %v834
          %v836 = vpop.f32.mrb[0].mxu0
          %v837 = vadd.f32 %v611, %v836
          %v838 = vpop.f32.mrb[0].mxu0
          %839 = vmatprep.mubr.f32.mxu0 0.0
          %v840 = vand.u32 %v490, 4294901760
          %841 = vmatmul.mubr.f32.gmra.mrb[0].mxu0 %v840
          %v842 = vpop.f32.mrb[0].mxu0
          %v843 = vadd.f32 %v621, %v842
          %v844 = vpop.f32.mrb[0].mxu0
          %845 = vmatprep.mubr.f32.mxu0 0.0
          %v846 = vand.u32 %v493, 4294901760
          %847 = vmatmul.mubr.f32.gmra.mrb[0].mxu0 %v846
          %v848 = vpop.f32.mrb[0].mxu0
          %v849 = vadd.f32 %v631, %v848
          %v850 = vpop.f32.mrb[0].mxu0
          %851 = vmatprep.mubr.f32.mxu0 0.0
          %v852 = vand.u32 %v496, 4294901760
          %853 = vmatmul.mubr.f32.gmra.mrb[0].mxu0 %v852
          %v854 = vpop.f32.mrb[0].mxu0
          %v855 = vadd.f32 %v641, %v854
          %v856 = vpop.f32.mrb[0].mxu0
          %857 = vmatprep.mubr.f32.mxu0 0.0
          %v858 = vand.u32 %v499, 4294901760
          %859 = vmatmul.mubr.f32.gmra.mrb[0].mxu0 %v858
          %v860 = vpop.f32.mrb[0].mxu0
          %v861 = vadd.f32 %v651, %v860
          %v862 = vpop.f32.mrb[0].mxu0
          %863 = vmatprep.mubr.f32.mxu0 0.0
          %v864 = vand.u32 %v502, 4294901760
          %865 = vmatmul.mubr.f32.gmra.mrb[0].mxu0 %v864
          %v866 = vpop.f32.mrb[0].mxu0
          %v867 = vadd.f32 %v661, %v866
          %v868 = vpop.f32.mrb[0].mxu0
          %869 = vmatprep.mubr.f32.mxu0 0.0
          %v870 = vand.u32 %v505, 4294901760
          %871 = vmatmul.mubr.f32.gmra.mrb[0].mxu0 %v870
          %v872 = vpop.f32.mrb[0].mxu0
          %v873 = vadd.f32 %v671, %v872
          %v874 = vpop.f32.mrb[0].mxu0
          %875 = vmatprep.mubr.f32.mxu0 0.0
          %v876 = vand.u32 %v508, 4294901760
          %877 = vmatmul.mubr.f32.gmra.mrb[0].mxu0 %v876
          %v878 = vpop.f32.mrb[0].mxu0
          %v879 = vadd.f32 %v681, %v878
          %v880 = vpop.f32.mrb[0].mxu0
          %881 = vmatprep.mubr.f32.mxu0 0.0
          %v882 = vand.u32 %v511, 4294901760
          %883 = vmatmul.mubr.f32.gmra.mrb[0].mxu0 %v882
          %v884 = vpop.f32.mrb[0].mxu0
          %v885 = vadd.f32 %v691, %v884
          %v886 = vpop.f32.mrb[0].mxu0
          %887 = vmatprep.mubr.f32.mxu0 0.0
          %v888 = vand.u32 %v514, 4294901760
          %889 = vmatmul.mubr.f32.gmra.mrb[0].mxu0 %v888
          %v890 = vpop.f32.mrb[0].mxu0
          %v891 = vadd.f32 %v701, %v890
          %v892 = vpop.f32.mrb[0].mxu0
          %893 = vmatprep.mubr.f32.mxu0 0.0
          %v894 = vand.u32 %v517, 4294901760
          %895 = vmatmul.mubr.f32.gmra.mrb[0].mxu0 %v894
          %v896 = vpop.f32.mrb[0].mxu0
          %v897 = vadd.f32 %v711, %v896
          %v898 = vpop.f32.mrb[0].mxu0
          %899 = vmatprep.mubr.f32.mxu0 0.0
          %v900 = vand.u32 %v520, 4294901760
          %901 = vmatmul.mubr.f32.gmra.mrb[0].mxu0 %v900
          %v902 = vpop.f32.mrb[0].mxu0
          %v903 = vadd.f32 %v721, %v902
          %v904 = vpop.f32.mrb[0].mxu0
          %905 = vmatprep.mubr.f32.mxu0 0.0
          %v906 = vand.u32 %v523, 4294901760
          %907 = vmatmul.mubr.f32.gmra.mrb[0].mxu0 %v906
          %v908 = vpop.f32.mrb[0].mxu0
          %v909 = vadd.f32 %v731, %v908
          %v910 = vpop.f32.mrb[0].mxu0
          %911 = vmatprep.mubr.f32.mxu0 0.0
          %v912 = vand.u32 %v526, 4294901760
          %913 = vmatmul.mubr.f32.gmra.mrb[0].mxu0 %v912
          %v914 = vpop.f32.mrb[0].mxu0
          %v915 = vadd.f32 %v741, %v914
          %v916 = vpop.f32.mrb[0].mxu0
          %917 = vmatprep.mubr.f32.mxu0 0.0
          %v918 = vand.u32 %v529, 4294901760
          %919 = vmatmul.mubr.f32.gmra.mrb[0].mxu0 %v918
          %v920 = vpop.f32.mrb[0].mxu0
          %v921 = vadd.f32 %v751, %v920
          %v922 = vpop.f32.mrb[0].mxu0
          %923 = vmatprep.mubr.f32.mxu0 0.0
          %v924 = vand.u32 %v532, 4294901760
          %925 = vmatmul.mubr.f32.gmra.mrb[0].mxu0 %v924
          %v926 = vpop.f32.mrb[0].mxu0
          %v927 = vadd.f32 %v761, %v926
          %v928 = vpop.f32.mrb[0].mxu0
          %929 = vdwg.mxu0
          %930 = vmatprep.subr.mxu0 0.0
          %v931 = vand.u32 %v536, 4294901760
          %v932 = vsub.f32 %v536, %v931
          %933 = vmatpush1.msra.mxu0 %v932
          %934 = vmatprep.subr.mxu0 0.0
          %935 = vmatpush1.msra.mxu0 0.0
          %936 = vmatprep.subr.mxu0 0.0
          %937 = vmatpush1.msra.mxu0 0.0
          %938 = vmatprep.subr.mxu0 0.0
          %939 = vmatpush1.msra.mxu0 0.0
          %940 = vmatprep.subr.mxu0 0.0
          %941 = vmatpush1.msra.mxu0 0.0
          %942 = vmatprep.subr.mxu0 0.0
          %943 = vmatpush1.msra.mxu0 0.0
          %944 = vmatprep.subr.mxu0 0.0
          %945 = vmatpush1.msra.mxu0 0.0
          %946 = vmatprep.subr.mxu0 0.0
          %947 = vmatpush1.msra.mxu0 0.0
          %948 = vmatprep.subr.mxu0 0.0
          %949 = vmatpush1.msra.mxu0 0.0
          %950 = vmatprep.subr.mxu0 0.0
          %951 = vmatpush1.msra.mxu0 0.0
          %952 = vmatprep.subr.mxu0 0.0
          %953 = vmatpush1.msra.mxu0 0.0
          %954 = vmatprep.subr.mxu0 0.0
          %955 = vmatpush1.msra.mxu0 0.0
          %956 = vmatprep.subr.mxu0 0.0
          %957 = vmatpush1.msra.mxu0 0.0
          %958 = vmatprep.subr.mxu0 0.0
          %959 = vmatpush1.msra.mxu0 0.0
          %960 = vmatprep.subr.mxu0 0.0
          %961 = vmatpush1.msra.mxu0 0.0
          %962 = vmatprep.subr.mxu0 0.0
          %963 = vmatpush1.msra.mxu0 0.0
          %964 = vmatprep.subr.mxu0 0.0
          %965 = vmatpush1.msra.mxu0 0.0
          %966 = vmatprep.subr.mxu0 0.0
          %967 = vmatpush1.msra.mxu0 0.0
          %968 = vmatprep.subr.mxu0 0.0
          %969 = vmatpush1.msra.mxu0 0.0
          %970 = vmatprep.subr.mxu0 0.0
          %971 = vmatpush1.msra.mxu0 0.0
          %972 = vmatprep.subr.mxu0 0.0
          %973 = vmatpush1.msra.mxu0 0.0
          %974 = vmatprep.subr.mxu0 0.0
          %975 = vmatpush1.msra.mxu0 0.0
          %976 = vmatprep.subr.mxu0 0.0
          %977 = vmatpush1.msra.mxu0 0.0
          %978 = vmatprep.subr.mxu0 0.0
          %979 = vmatpush1.msra.mxu0 0.0
          %980 = vmatprep.subr.mxu0 0.0
          %981 = vmatpush1.msra.mxu0 0.0
          %982 = vmatprep.subr.mxu0 0.0
          %983 = vmatpush1.msra.mxu0 0.0
          %984 = vmatprep.subr.mxu0 0.0
          %985 = vmatpush1.msra.mxu0 0.0
          %986 = vmatprep.subr.mxu0 0.0
          %987 = vmatpush1.msra.mxu0 0.0
          %988 = vmatprep.subr.mxu0 0.0
          %989 = vmatpush1.msra.mxu0 0.0
          %990 = vmatprep.subr.mxu0 0.0
          %991 = vmatpush1.msra.mxu0 0.0
          %992 = vmatprep.subr.mxu0 0.0
          %993 = vmatpush1.msra.mxu0 0.0
          %994 = vmatprep.subr.mxu0 0.0
          %995 = vmatpush1.msra.mxu0 0.0
          %996 = vmatprep.mubr.f32.mxu0 0.0
          %v997 = vand.u32 %v487, 4294901760
          %v998 = vsub.f32 %v487, %v997
          %999 = vmatmul.mubr.f32.gmra.mrb[0].mxu0 %v998
          %v1000 = vpop.f32.mrb[0].mxu0
          %v1001 = vadd.f32 %v837, %v1000
          %v1002 = vpop.f32.mrb[0].mxu0
          %1003 = vmatprep.mubr.f32.mxu0 0.0
          %v1004 = vand.u32 %v490, 4294901760
          %v1005 = vsub.f32 %v490, %v1004
          %1006 = vmatmul.mubr.f32.gmra.mrb[0].mxu0 %v1005
          %v1007 = vpop.f32.mrb[0].mxu0
          %v1008 = vadd.f32 %v843, %v1007
          %v1009 = vpop.f32.mrb[0].mxu0
          %1010 = vmatprep.mubr.f32.mxu0 0.0
          %v1011 = vand.u32 %v493, 4294901760
          %v1012 = vsub.f32 %v493, %v1011
          %1013 = vmatmul.mubr.f32.gmra.mrb[0].mxu0 %v1012
          %v1014 = vpop.f32.mrb[0].mxu0
          %v1015 = vadd.f32 %v849, %v1014
          %v1016 = vpop.f32.mrb[0].mxu0
          %1017 = vmatprep.mubr.f32.mxu0 0.0
          %v1018 = vand.u32 %v496, 4294901760
          %v1019 = vsub.f32 %v496, %v1018
          %1020 = vmatmul.mubr.f32.gmra.mrb[0].mxu0 %v1019
          %v1021 = vpop.f32.mrb[0].mxu0
          %v1022 = vadd.f32 %v855, %v1021
          %v1023 = vpop.f32.mrb[0].mxu0
          %1024 = vmatprep.mubr.f32.mxu0 0.0
          %v1025 = vand.u32 %v499, 4294901760
          %v1026 = vsub.f32 %v499, %v1025
          %1027 = vmatmul.mubr.f32.gmra.mrb[0].mxu0 %v1026
          %v1028 = vpop.f32.mrb[0].mxu0
          %v1029 = vadd.f32 %v861, %v1028
          %v1030 = vpop.f32.mrb[0].mxu0
          %1031 = vmatprep.mubr.f32.mxu0 0.0
          %v1032 = vand.u32 %v502, 4294901760
          %v1033 = vsub.f32 %v502, %v1032
          %1034 = vmatmul.mubr.f32.gmra.mrb[0].mxu0 %v1033
          %v1035 = vpop.f32.mrb[0].mxu0
          %v1036 = vadd.f32 %v867, %v1035
          %v1037 = vpop.f32.mrb[0].mxu0
          %1038 = vmatprep.mubr.f32.mxu0 0.0
          %v1039 = vand.u32 %v505, 4294901760
          %v1040 = vsub.f32 %v505, %v1039
          %1041 = vmatmul.mubr.f32.gmra.mrb[0].mxu0 %v1040
          %v1042 = vpop.f32.mrb[0].mxu0
          %v1043 = vadd.f32 %v873, %v1042
          %v1044 = vpop.f32.mrb[0].mxu0
          %1045 = vmatprep.mubr.f32.mxu0 0.0
          %v1046 = vand.u32 %v508, 4294901760
          %v1047 = vsub.f32 %v508, %v1046
          %1048 = vmatmul.mubr.f32.gmra.mrb[0].mxu0 %v1047
          %v1049 = vpop.f32.mrb[0].mxu0
          %v1050 = vadd.f32 %v879, %v1049
          %v1051 = vpop.f32.mrb[0].mxu0
          %1052 = vmatprep.mubr.f32.mxu0 0.0
          %v1053 = vand.u32 %v511, 4294901760
          %v1054 = vsub.f32 %v511, %v1053
          %1055 = vmatmul.mubr.f32.gmra.mrb[0].mxu0 %v1054
          %v1056 = vpop.f32.mrb[0].mxu0
          %v1057 = vadd.f32 %v885, %v1056
          %v1058 = vpop.f32.mrb[0].mxu0
          %1059 = vmatprep.mubr.f32.mxu0 0.0
          %v1060 = vand.u32 %v514, 4294901760
          %v1061 = vsub.f32 %v514, %v1060
          %1062 = vmatmul.mubr.f32.gmra.mrb[0].mxu0 %v1061
          %v1063 = vpop.f32.mrb[0].mxu0
          %v1064 = vadd.f32 %v891, %v1063
          %v1065 = vpop.f32.mrb[0].mxu0
          %1066 = vmatprep.mubr.f32.mxu0 0.0
          %v1067 = vand.u32 %v517, 4294901760
          %v1068 = vsub.f32 %v517, %v1067
          %1069 = vmatmul.mubr.f32.gmra.mrb[0].mxu0 %v1068
          %v1070 = vpop.f32.mrb[0].mxu0
          %v1071 = vadd.f32 %v897, %v1070
          %v1072 = vpop.f32.mrb[0].mxu0
          %1073 = vmatprep.mubr.f32.mxu0 0.0
          %v1074 = vand.u32 %v520, 4294901760
          %v1075 = vsub.f32 %v520, %v1074
          %1076 = vmatmul.mubr.f32.gmra.mrb[0].mxu0 %v1075
          %v1077 = vpop.f32.mrb[0].mxu0
          %v1078 = vadd.f32 %v903, %v1077
          %v1079 = vpop.f32.mrb[0].mxu0
          %1080 = vmatprep.mubr.f32.mxu0 0.0
          %v1081 = vand.u32 %v523, 4294901760
          %v1082 = vsub.f32 %v523, %v1081
          %1083 = vmatmul.mubr.f32.gmra.mrb[0].mxu0 %v1082
          %v1084 = vpop.f32.mrb[0].mxu0
          %v1085 = vadd.f32 %v909, %v1084
          %v1086 = vpop.f32.mrb[0].mxu0
          %1087 = vmatprep.mubr.f32.mxu0 0.0
          %v1088 = vand.u32 %v526, 4294901760
          %v1089 = vsub.f32 %v526, %v1088
          %1090 = vmatmul.mubr.f32.gmra.mrb[0].mxu0 %v1089
          %v1091 = vpop.f32.mrb[0].mxu0
          %v1092 = vadd.f32 %v915, %v1091
          %v1093 = vpop.f32.mrb[0].mxu0
          %1094 = vmatprep.mubr.f32.mxu0 0.0
          %v1095 = vand.u32 %v529, 4294901760
          %v1096 = vsub.f32 %v529, %v1095
          %1097 = vmatmul.mubr.f32.gmra.mrb[0].mxu0 %v1096
          %v1098 = vpop.f32.mrb[0].mxu0
          %v1099 = vadd.f32 %v921, %v1098
          %v1100 = vpop.f32.mrb[0].mxu0
          %1101 = vmatprep.mubr.f32.mxu0 0.0
          %v1102 = vand.u32 %v532, 4294901760
          %v1103 = vsub.f32 %v532, %v1102
          %1104 = vmatmul.mubr.f32.gmra.mrb[0].mxu0 %v1103
          %v1105 = vpop.f32.mrb[0].mxu0
          %v1106 = vadd.f32 %v927, %v1105
          %v1107 = vpop.f32.mrb[0].mxu0
          %1108 = vdwg.mxu0
          %1109 = vmatprep.subr.mxu0 0.0
          %v1110 = vand.u32 %v536, 4294901760
          %1111 = vmatpush1.msra.mxu0 %v1110
          %1112 = vmatprep.subr.mxu0 0.0
          %1113 = vmatpush1.msra.mxu0 0.0
          %1114 = vmatprep.subr.mxu0 0.0
          %1115 = vmatpush1.msra.mxu0 0.0
          %1116 = vmatprep.subr.mxu0 0.0
          %1117 = vmatpush1.msra.mxu0 0.0
          %1118 = vmatprep.subr.mxu0 0.0
          %1119 = vmatpush1.msra.mxu0 0.0
          %1120 = vmatprep.subr.mxu0 0.0
          %1121 = vmatpush1.msra.mxu0 0.0
          %1122 = vmatprep.subr.mxu0 0.0
          %1123 = vmatpush1.msra.mxu0 0.0
          %1124 = vmatprep.subr.mxu0 0.0
          %1125 = vmatpush1.msra.mxu0 0.0
          %1126 = vmatprep.subr.mxu0 0.0
          %1127 = vmatpush1.msra.mxu0 0.0
          %1128 = vmatprep.subr.mxu0 0.0
          %1129 = vmatpush1.msra.mxu0 0.0
          %1130 = vmatprep.subr.mxu0 0.0
          %1131 = vmatpush1.msra.mxu0 0.0
          %1132 = vmatprep.subr.mxu0 0.0
          %1133 = vmatpush1.msra.mxu0 0.0
          %1134 = vmatprep.subr.mxu0 0.0
          %1135 = vmatpush1.msra.mxu0 0.0
          %1136 = vmatprep.subr.mxu0 0.0
          %1137 = vmatpush1.msra.mxu0 0.0
          %1138 = vmatprep.subr.mxu0 0.0
          %1139 = vmatpush1.msra.mxu0 0.0
          %1140 = vmatprep.subr.mxu0 0.0
          %1141 = vmatpush1.msra.mxu0 0.0
          %1142 = vmatprep.subr.mxu0 0.0
          %1143 = vmatpush1.msra.mxu0 0.0
          %1144 = vmatprep.subr.mxu0 0.0
          %1145 = vmatpush1.msra.mxu0 0.0
          %1146 = vmatprep.subr.mxu0 0.0
          %1147 = vmatpush1.msra.mxu0 0.0
          %1148 = vmatprep.subr.mxu0 0.0
          %1149 = vmatpush1.msra.mxu0 0.0
          %1150 = vmatprep.subr.mxu0 0.0
          %1151 = vmatpush1.msra.mxu0 0.0
          %1152 = vmatprep.subr.mxu0 0.0
          %1153 = vmatpush1.msra.mxu0 0.0
          %1154 = vmatprep.subr.mxu0 0.0
          %1155 = vmatpush1.msra.mxu0 0.0
          %1156 = vmatprep.subr.mxu0 0.0
          %1157 = vmatpush1.msra.mxu0 0.0
          %1158 = vmatprep.subr.mxu0 0.0
          %1159 = vmatpush1.msra.mxu0 0.0
          %1160 = vmatprep.subr.mxu0 0.0
          %1161 = vmatpush1.msra.mxu0 0.0
          %1162 = vmatprep.subr.mxu0 0.0
          %1163 = vmatpush1.msra.mxu0 0.0
          %1164 = vmatprep.subr.mxu0 0.0
          %1165 = vmatpush1.msra.mxu0 0.0
          %1166 = vmatprep.subr.mxu0 0.0
          %1167 = vmatpush1.msra.mxu0 0.0
          %1168 = vmatprep.subr.mxu0 0.0
          %1169 = vmatpush1.msra.mxu0 0.0
          %1170 = vmatprep.subr.mxu0 0.0
          %1171 = vmatpush1.msra.mxu0 0.0
          %1172 = vmatprep.subr.mxu0 0.0
          %1173 = vmatpush1.msra.mxu0 0.0
          %1174 = vmatprep.mubr.f32.mxu0 0.0
          %v1175 = vand.u32 %v487, 4294901760
          %v1176 = vsub.f32 %v487, %v1175
          %v1177 = vand.u32 %v1176, 4294901760
          %1178 = vmatmul.mubr.f32.gmra.mrb[0].mxu0 %v1177
          %v1179 = vpop.f32.mrb[0].mxu0
          %v1180 = vadd.f32 %v1001, %v1179
          %v1181 = vpop.f32.mrb[0].mxu0
          %1182 = vmatprep.mubr.f32.mxu0 0.0
          %v1183 = vand.u32 %v490, 4294901760
          %v1184 = vsub.f32 %v490, %v1183
          %v1185 = vand.u32 %v1184, 4294901760
          %1186 = vmatmul.mubr.f32.gmra.mrb[0].mxu0 %v1185
          %v1187 = vpop.f32.mrb[0].mxu0
          %v1188 = vadd.f32 %v1008, %v1187
          %v1189 = vpop.f32.mrb[0].mxu0
          %1190 = vmatprep.mubr.f32.mxu0 0.0
          %v1191 = vand.u32 %v493, 4294901760
          %v1192 = vsub.f32 %v493, %v1191
          %v1193 = vand.u32 %v1192, 4294901760
          %1194 = vmatmul.mubr.f32.gmra.mrb[0].mxu0 %v1193
          %v1195 = vpop.f32.mrb[0].mxu0
          %v1196 = vadd.f32 %v1015, %v1195
          %v1197 = vpop.f32.mrb[0].mxu0
          %1198 = vmatprep.mubr.f32.mxu0 0.0
          %v1199 = vand.u32 %v496, 4294901760
          %v1200 = vsub.f32 %v496, %v1199
          %v1201 = vand.u32 %v1200, 4294901760
          %1202 = vmatmul.mubr.f32.gmra.mrb[0].mxu0 %v1201
          %v1203 = vpop.f32.mrb[0].mxu0
          %v1204 = vadd.f32 %v1022, %v1203
          %v1205 = vpop.f32.mrb[0].mxu0
          %1206 = vmatprep.mubr.f32.mxu0 0.0
          %v1207 = vand.u32 %v499, 4294901760
          %v1208 = vsub.f32 %v499, %v1207
          %v1209 = vand.u32 %v1208, 4294901760
          %1210 = vmatmul.mubr.f32.gmra.mrb[0].mxu0 %v1209
          %v1211 = vpop.f32.mrb[0].mxu0
          %v1212 = vadd.f32 %v1029, %v1211
          %v1213 = vpop.f32.mrb[0].mxu0
          %1214 = vmatprep.mubr.f32.mxu0 0.0
          %v1215 = vand.u32 %v502, 4294901760
          %v1216 = vsub.f32 %v502, %v1215
          %v1217 = vand.u32 %v1216, 4294901760
          %1218 = vmatmul.mubr.f32.gmra.mrb[0].mxu0 %v1217
          %v1219 = vpop.f32.mrb[0].mxu0
          %v1220 = vadd.f32 %v1036, %v1219
          %v1221 = vpop.f32.mrb[0].mxu0
          %1222 = vmatprep.mubr.f32.mxu0 0.0
          %v1223 = vand.u32 %v505, 4294901760
          %v1224 = vsub.f32 %v505, %v1223
          %v1225 = vand.u32 %v1224, 4294901760
          %1226 = vmatmul.mubr.f32.gmra.mrb[0].mxu0 %v1225
          %v1227 = vpop.f32.mrb[0].mxu0
          %v1228 = vadd.f32 %v1043, %v1227
          %v1229 = vpop.f32.mrb[0].mxu0
          %1230 = vmatprep.mubr.f32.mxu0 0.0
          %v1231 = vand.u32 %v508, 4294901760
          %v1232 = vsub.f32 %v508, %v1231
          %v1233 = vand.u32 %v1232, 4294901760
          %1234 = vmatmul.mubr.f32.gmra.mrb[0].mxu0 %v1233
          %v1235 = vpop.f32.mrb[0].mxu0
          %v1236 = vadd.f32 %v1050, %v1235
          %v1237 = vpop.f32.mrb[0].mxu0
          %1238 = vmatprep.mubr.f32.mxu0 0.0
          %v1239 = vand.u32 %v511, 4294901760
          %v1240 = vsub.f32 %v511, %v1239
          %v1241 = vand.u32 %v1240, 4294901760
          %1242 = vmatmul.mubr.f32.gmra.mrb[0].mxu0 %v1241
          %v1243 = vpop.f32.mrb[0].mxu0
          %v1244 = vadd.f32 %v1057, %v1243
          %v1245 = vpop.f32.mrb[0].mxu0
          %1246 = vmatprep.mubr.f32.mxu0 0.0
          %v1247 = vand.u32 %v514, 4294901760
          %v1248 = vsub.f32 %v514, %v1247
          %v1249 = vand.u32 %v1248, 4294901760
          %1250 = vmatmul.mubr.f32.gmra.mrb[0].mxu0 %v1249
          %v1251 = vpop.f32.mrb[0].mxu0
          %v1252 = vadd.f32 %v1064, %v1251
          %v1253 = vpop.f32.mrb[0].mxu0
          %1254 = vmatprep.mubr.f32.mxu0 0.0
          %v1255 = vand.u32 %v517, 4294901760
          %v1256 = vsub.f32 %v517, %v1255
          %v1257 = vand.u32 %v1256, 4294901760
          %1258 = vmatmul.mubr.f32.gmra.mrb[0].mxu0 %v1257
          %v1259 = vpop.f32.mrb[0].mxu0
          %v1260 = vadd.f32 %v1071, %v1259
          %v1261 = vpop.f32.mrb[0].mxu0
          %1262 = vmatprep.mubr.f32.mxu0 0.0
          %v1263 = vand.u32 %v520, 4294901760
          %v1264 = vsub.f32 %v520, %v1263
          %v1265 = vand.u32 %v1264, 4294901760
          %1266 = vmatmul.mubr.f32.gmra.mrb[0].mxu0 %v1265
          %v1267 = vpop.f32.mrb[0].mxu0
          %v1268 = vadd.f32 %v1078, %v1267
          %v1269 = vpop.f32.mrb[0].mxu0
          %1270 = vmatprep.mubr.f32.mxu0 0.0
          %v1271 = vand.u32 %v523, 4294901760
          %v1272 = vsub.f32 %v523, %v1271
          %v1273 = vand.u32 %v1272, 4294901760
          %1274 = vmatmul.mubr.f32.gmra.mrb[0].mxu0 %v1273
          %v1275 = vpop.f32.mrb[0].mxu0
          %v1276 = vadd.f32 %v1085, %v1275
          %v1277 = vpop.f32.mrb[0].mxu0
          %1278 = vmatprep.mubr.f32.mxu0 0.0
          %v1279 = vand.u32 %v526, 4294901760
          %v1280 = vsub.f32 %v526, %v1279
          %v1281 = vand.u32 %v1280, 4294901760
          %1282 = vmatmul.mubr.f32.gmra.mrb[0].mxu0 %v1281
          %v1283 = vpop.f32.mrb[0].mxu0
          %v1284 = vadd.f32 %v1092, %v1283
          %v1285 = vpop.f32.mrb[0].mxu0
          %1286 = vmatprep.mubr.f32.mxu0 0.0
          %v1287 = vand.u32 %v529, 4294901760
          %v1288 = vsub.f32 %v529, %v1287
          %v1289 = vand.u32 %v1288, 4294901760
          %1290 = vmatmul.mubr.f32.gmra.mrb[0].mxu0 %v1289
          %v1291 = vpop.f32.mrb[0].mxu0
          %v1292 = vadd.f32 %v1099, %v1291
          %v1293 = vpop.f32.mrb[0].mxu0
          %1294 = vmatprep.mubr.f32.mxu0 0.0
          %v1295 = vand.u32 %v532, 4294901760
          %v1296 = vsub.f32 %v532, %v1295
          %v1297 = vand.u32 %v1296, 4294901760
          %1298 = vmatmul.mubr.f32.gmra.mrb[0].mxu0 %v1297
          %v1299 = vpop.f32.mrb[0].mxu0
          %v1300 = vadd.f32 %v1106, %v1299
          %v1301 = vpop.f32.mrb[0].mxu0
          %1302 = vdwg.mxu0
          %1303 = vmatprep.subr.mxu0 0.0
          %v1304 = vand.u32 %v536, 4294901760
          %v1305 = vsub.f32 %v536, %v1304
          %v1306 = vand.u32 %v1305, 4294901760
          %1307 = vmatpush1.msra.mxu0 %v1306
          %1308 = vmatprep.subr.mxu0 0.0
          %1309 = vmatpush1.msra.mxu0 0.0
          %1310 = vmatprep.subr.mxu0 0.0
          %1311 = vmatpush1.msra.mxu0 0.0
          %1312 = vmatprep.subr.mxu0 0.0
          %1313 = vmatpush1.msra.mxu0 0.0
          %1314 = vmatprep.subr.mxu0 0.0
          %1315 = vmatpush1.msra.mxu0 0.0
          %1316 = vmatprep.subr.mxu0 0.0
          %1317 = vmatpush1.msra.mxu0 0.0
          %1318 = vmatprep.subr.mxu0 0.0
          %1319 = vmatpush1.msra.mxu0 0.0
          %1320 = vmatprep.subr.mxu0 0.0
          %1321 = vmatpush1.msra.mxu0 0.0
          %1322 = vmatprep.subr.mxu0 0.0
          %1323 = vmatpush1.msra.mxu0 0.0
          %1324 = vmatprep.subr.mxu0 0.0
          %1325 = vmatpush1.msra.mxu0 0.0
          %1326 = vmatprep.subr.mxu0 0.0
          %1327 = vmatpush1.msra.mxu0 0.0
          %1328 = vmatprep.subr.mxu0 0.0
          %1329 = vmatpush1.msra.mxu0 0.0
          %1330 = vmatprep.subr.mxu0 0.0
          %1331 = vmatpush1.msra.mxu0 0.0
          %1332 = vmatprep.subr.mxu0 0.0
          %1333 = vmatpush1.msra.mxu0 0.0
          %1334 = vmatprep.subr.mxu0 0.0
          %1335 = vmatpush1.msra.mxu0 0.0
          %1336 = vmatprep.subr.mxu0 0.0
          %1337 = vmatpush1.msra.mxu0 0.0
          %1338 = vmatprep.subr.mxu0 0.0
          %1339 = vmatpush1.msra.mxu0 0.0
          %1340 = vmatprep.subr.mxu0 0.0
          %1341 = vmatpush1.msra.mxu0 0.0
          %1342 = vmatprep.subr.mxu0 0.0
          %1343 = vmatpush1.msra.mxu0 0.0
          %1344 = vmatprep.subr.mxu0 0.0
          %1345 = vmatpush1.msra.mxu0 0.0
          %1346 = vmatprep.subr.mxu0 0.0
          %1347 = vmatpush1.msra.mxu0 0.0
          %1348 = vmatprep.subr.mxu0 0.0
          %1349 = vmatpush1.msra.mxu0 0.0
          %1350 = vmatprep.subr.mxu0 0.0
          %1351 = vmatpush1.msra.mxu0 0.0
          %1352 = vmatprep.subr.mxu0 0.0
          %1353 = vmatpush1.msra.mxu0 0.0
          %1354 = vmatprep.subr.mxu0 0.0
          %1355 = vmatpush1.msra.mxu0 0.0
          %1356 = vmatprep.subr.mxu0 0.0
          %1357 = vmatpush1.msra.mxu0 0.0
          %1358 = vmatprep.subr.mxu0 0.0
          %1359 = vmatpush1.msra.mxu0 0.0
          %1360 = vmatprep.subr.mxu0 0.0
          %1361 = vmatpush1.msra.mxu0 0.0
          %1362 = vmatprep.subr.mxu0 0.0
          %1363 = vmatpush1.msra.mxu0 0.0
          %1364 = vmatprep.subr.mxu0 0.0
          %1365 = vmatpush1.msra.mxu0 0.0
          %1366 = vmatprep.subr.mxu0 0.0
          %1367 = vmatpush1.msra.mxu0 0.0
          %1368 = vmatprep.subr.mxu0 0.0
          %1369 = vmatpush1.msra.mxu0 0.0
          %1370 = vmatprep.mubr.f32.mxu0 0.0
          %v1371 = vand.u32 %v487, 4294901760
          %1372 = vmatmul.mubr.f32.gmra.mrb[0].mxu0 %v1371
          %v1373 = vpop.f32.mrb[0].mxu0
          %v1374 = vadd.f32 %v1180, %v1373
          %v1375 = vpop.f32.mrb[0].mxu0
          %1376 = vmatprep.mubr.f32.mxu0 0.0
          %v1377 = vand.u32 %v490, 4294901760
          %1378 = vmatmul.mubr.f32.gmra.mrb[0].mxu0 %v1377
          %v1379 = vpop.f32.mrb[0].mxu0
          %v1380 = vadd.f32 %v1188, %v1379
          %v1381 = vpop.f32.mrb[0].mxu0
          %1382 = vmatprep.mubr.f32.mxu0 0.0
          %v1383 = vand.u32 %v493, 4294901760
          %1384 = vmatmul.mubr.f32.gmra.mrb[0].mxu0 %v1383
          %v1385 = vpop.f32.mrb[0].mxu0
          %v1386 = vadd.f32 %v1196, %v1385
          %v1387 = vpop.f32.mrb[0].mxu0
          %1388 = vmatprep.mubr.f32.mxu0 0.0
          %v1389 = vand.u32 %v496, 4294901760
          %1390 = vmatmul.mubr.f32.gmra.mrb[0].mxu0 %v1389
          %v1391 = vpop.f32.mrb[0].mxu0
          %v1392 = vadd.f32 %v1204, %v1391
          %v1393 = vpop.f32.mrb[0].mxu0
          %1394 = vmatprep.mubr.f32.mxu0 0.0
          %v1395 = vand.u32 %v499, 4294901760
          %1396 = vmatmul.mubr.f32.gmra.mrb[0].mxu0 %v1395
          %v1397 = vpop.f32.mrb[0].mxu0
          %v1398 = vadd.f32 %v1212, %v1397
          %v1399 = vpop.f32.mrb[0].mxu0
          %1400 = vmatprep.mubr.f32.mxu0 0.0
          %v1401 = vand.u32 %v502, 4294901760
          %1402 = vmatmul.mubr.f32.gmra.mrb[0].mxu0 %v1401
          %v1403 = vpop.f32.mrb[0].mxu0
          %v1404 = vadd.f32 %v1220, %v1403
          %v1405 = vpop.f32.mrb[0].mxu0
          %1406 = vmatprep.mubr.f32.mxu0 0.0
          %v1407 = vand.u32 %v505, 4294901760
          %1408 = vmatmul.mubr.f32.gmra.mrb[0].mxu0 %v1407
          %v1409 = vpop.f32.mrb[0].mxu0
          %v1410 = vadd.f32 %v1228, %v1409
          %v1411 = vpop.f32.mrb[0].mxu0
          %1412 = vmatprep.mubr.f32.mxu0 0.0
          %v1413 = vand.u32 %v508, 4294901760
          %1414 = vmatmul.mubr.f32.gmra.mrb[0].mxu0 %v1413
          %v1415 = vpop.f32.mrb[0].mxu0
          %v1416 = vadd.f32 %v1236, %v1415
          %v1417 = vpop.f32.mrb[0].mxu0
          %1418 = vmatprep.mubr.f32.mxu0 0.0
          %v1419 = vand.u32 %v511, 4294901760
          %1420 = vmatmul.mubr.f32.gmra.mrb[0].mxu0 %v1419
          %v1421 = vpop.f32.mrb[0].mxu0
          %v1422 = vadd.f32 %v1244, %v1421
          %v1423 = vpop.f32.mrb[0].mxu0
          %1424 = vmatprep.mubr.f32.mxu0 0.0
          %v1425 = vand.u32 %v514, 4294901760
          %1426 = vmatmul.mubr.f32.gmra.mrb[0].mxu0 %v1425
          %v1427 = vpop.f32.mrb[0].mxu0
          %v1428 = vadd.f32 %v1252, %v1427
          %v1429 = vpop.f32.mrb[0].mxu0
          %1430 = vmatprep.mubr.f32.mxu0 0.0
          %v1431 = vand.u32 %v517, 4294901760
          %1432 = vmatmul.mubr.f32.gmra.mrb[0].mxu0 %v1431
          %v1433 = vpop.f32.mrb[0].mxu0
          %v1434 = vadd.f32 %v1260, %v1433
          %v1435 = vpop.f32.mrb[0].mxu0
          %1436 = vmatprep.mubr.f32.mxu0 0.0
          %v1437 = vand.u32 %v520, 4294901760
          %1438 = vmatmul.mubr.f32.gmra.mrb[0].mxu0 %v1437
          %v1439 = vpop.f32.mrb[0].mxu0
          %v1440 = vadd.f32 %v1268, %v1439
          %v1441 = vpop.f32.mrb[0].mxu0
          %1442 = vmatprep.mubr.f32.mxu0 0.0
          %v1443 = vand.u32 %v523, 4294901760
          %1444 = vmatmul.mubr.f32.gmra.mrb[0].mxu0 %v1443
          %v1445 = vpop.f32.mrb[0].mxu0
          %v1446 = vadd.f32 %v1276, %v1445
          %v1447 = vpop.f32.mrb[0].mxu0
          %1448 = vmatprep.mubr.f32.mxu0 0.0
          %v1449 = vand.u32 %v526, 4294901760
          %1450 = vmatmul.mubr.f32.gmra.mrb[0].mxu0 %v1449
          %v1451 = vpop.f32.mrb[0].mxu0
          %v1452 = vadd.f32 %v1284, %v1451
          %v1453 = vpop.f32.mrb[0].mxu0
          %1454 = vmatprep.mubr.f32.mxu0 0.0
          %v1455 = vand.u32 %v529, 4294901760
          %1456 = vmatmul.mubr.f32.gmra.mrb[0].mxu0 %v1455
          %v1457 = vpop.f32.mrb[0].mxu0
          %v1458 = vadd.f32 %v1292, %v1457
          %v1459 = vpop.f32.mrb[0].mxu0
          %1460 = vmatprep.mubr.f32.mxu0 0.0
          %v1461 = vand.u32 %v532, 4294901760
          %1462 = vmatmul.mubr.f32.gmra.mrb[0].mxu0 %v1461
          %v1463 = vpop.f32.mrb[0].mxu0
          %v1464 = vadd.f32 %v1300, %v1463
          %v1465 = vpop.f32.mrb[0].mxu0
          %1466 = vdwg.mxu0
          %1467 = vmatprep.subr.mxu0 0.0
          %v1468 = vand.u32 %v536, 4294901760
          %1469 = vmatpush1.msra.mxu0 %v1468
          %1470 = vmatprep.subr.mxu0 0.0
          %1471 = vmatpush1.msra.mxu0 0.0
          %1472 = vmatprep.subr.mxu0 0.0
          %1473 = vmatpush1.msra.mxu0 0.0
          %1474 = vmatprep.subr.mxu0 0.0
          %1475 = vmatpush1.msra.mxu0 0.0
          %1476 = vmatprep.subr.mxu0 0.0
          %1477 = vmatpush1.msra.mxu0 0.0
          %1478 = vmatprep.subr.mxu0 0.0
          %1479 = vmatpush1.msra.mxu0 0.0
          %1480 = vmatprep.subr.mxu0 0.0
          %1481 = vmatpush1.msra.mxu0 0.0
          %1482 = vmatprep.subr.mxu0 0.0
          %1483 = vmatpush1.msra.mxu0 0.0
          %1484 = vmatprep.subr.mxu0 0.0
          %1485 = vmatpush1.msra.mxu0 0.0
          %1486 = vmatprep.subr.mxu0 0.0
          %1487 = vmatpush1.msra.mxu0 0.0
          %1488 = vmatprep.subr.mxu0 0.0
          %1489 = vmatpush1.msra.mxu0 0.0
          %1490 = vmatprep.subr.mxu0 0.0
          %1491 = vmatpush1.msra.mxu0 0.0
          %1492 = vmatprep.subr.mxu0 0.0
          %1493 = vmatpush1.msra.mxu0 0.0
          %1494 = vmatprep.subr.mxu0 0.0
          %1495 = vmatpush1.msra.mxu0 0.0
          %1496 = vmatprep.subr.mxu0 0.0
          %1497 = vmatpush1.msra.mxu0 0.0
          %1498 = vmatprep.subr.mxu0 0.0
          %1499 = vmatpush1.msra.mxu0 0.0
          %1500 = vmatprep.subr.mxu0 0.0
          %1501 = vmatpush1.msra.mxu0 0.0
          %1502 = vmatprep.subr.mxu0 0.0
          %1503 = vmatpush1.msra.mxu0 0.0
          %1504 = vmatprep.subr.mxu0 0.0
          %1505 = vmatpush1.msra.mxu0 0.0
          %1506 = vmatprep.subr.mxu0 0.0
          %1507 = vmatpush1.msra.mxu0 0.0
          %1508 = vmatprep.subr.mxu0 0.0
          %1509 = vmatpush1.msra.mxu0 0.0
          %1510 = vmatprep.subr.mxu0 0.0
          %1511 = vmatpush1.msra.mxu0 0.0
          %1512 = vmatprep.subr.mxu0 0.0
          %1513 = vmatpush1.msra.mxu0 0.0
          %1514 = vmatprep.subr.mxu0 0.0
          %1515 = vmatpush1.msra.mxu0 0.0
          %1516 = vmatprep.subr.mxu0 0.0
          %1517 = vmatpush1.msra.mxu0 0.0
          %1518 = vmatprep.subr.mxu0 0.0
          %1519 = vmatpush1.msra.mxu0 0.0
          %1520 = vmatprep.subr.mxu0 0.0
          %1521 = vmatpush1.msra.mxu0 0.0
          %1522 = vmatprep.subr.mxu0 0.0
          %1523 = vmatpush1.msra.mxu0 0.0
          %1524 = vmatprep.subr.mxu0 0.0
          %1525 = vmatpush1.msra.mxu0 0.0
          %1526 = vmatprep.subr.mxu0 0.0
          %1527 = vmatpush1.msra.mxu0 0.0
          %1528 = vmatprep.subr.mxu0 0.0
          %1529 = vmatpush1.msra.mxu0 0.0
          %1530 = vmatprep.subr.mxu0 0.0
          %1531 = vmatpush1.msra.mxu0 0.0
          %1532 = vmatprep.mubr.f32.mxu0 0.0
          %v1533 = vand.u32 %v487, 4294901760
          %1534 = vmatmul.mubr.f32.gmra.mrb[0].mxu0 %v1533
          %v1535 = vpop.f32.mrb[0].mxu0
          %v1536 = vadd.f32 %v1374, %v1535
          %v1537 = vpop.f32.mrb[0].mxu0
          %1538 = vmatprep.mubr.f32.mxu0 0.0
          %v1539 = vand.u32 %v490, 4294901760
          %1540 = vmatmul.mubr.f32.gmra.mrb[0].mxu0 %v1539
          %v1541 = vpop.f32.mrb[0].mxu0
          %v1542 = vadd.f32 %v1380, %v1541
          %v1543 = vpop.f32.mrb[0].mxu0
          %1544 = vmatprep.mubr.f32.mxu0 0.0
          %v1545 = vand.u32 %v493, 4294901760
          %1546 = vmatmul.mubr.f32.gmra.mrb[0].mxu0 %v1545
          %v1547 = vpop.f32.mrb[0].mxu0
          %v1548 = vadd.f32 %v1386, %v1547
          %v1549 = vpop.f32.mrb[0].mxu0
          %1550 = vmatprep.mubr.f32.mxu0 0.0
          %v1551 = vand.u32 %v496, 4294901760
          %1552 = vmatmul.mubr.f32.gmra.mrb[0].mxu0 %v1551
          %v1553 = vpop.f32.mrb[0].mxu0
          %v1554 = vadd.f32 %v1392, %v1553
          %v1555 = vpop.f32.mrb[0].mxu0
          %1556 = vmatprep.mubr.f32.mxu0 0.0
          %v1557 = vand.u32 %v499, 4294901760
          %1558 = vmatmul.mubr.f32.gmra.mrb[0].mxu0 %v1557
          %v1559 = vpop.f32.mrb[0].mxu0
          %v1560 = vadd.f32 %v1398, %v1559
          %v1561 = vpop.f32.mrb[0].mxu0
          %1562 = vmatprep.mubr.f32.mxu0 0.0
          %v1563 = vand.u32 %v502, 4294901760
          %1564 = vmatmul.mubr.f32.gmra.mrb[0].mxu0 %v1563
          %v1565 = vpop.f32.mrb[0].mxu0
          %v1566 = vadd.f32 %v1404, %v1565
          %v1567 = vpop.f32.mrb[0].mxu0
          %1568 = vmatprep.mubr.f32.mxu0 0.0
          %v1569 = vand.u32 %v505, 4294901760
          %1570 = vmatmul.mubr.f32.gmra.mrb[0].mxu0 %v1569
          %v1571 = vpop.f32.mrb[0].mxu0
          %v1572 = vadd.f32 %v1410, %v1571
          %v1573 = vpop.f32.mrb[0].mxu0
          %1574 = vmatprep.mubr.f32.mxu0 0.0
          %v1575 = vand.u32 %v508, 4294901760
          %1576 = vmatmul.mubr.f32.gmra.mrb[0].mxu0 %v1575
          %v1577 = vpop.f32.mrb[0].mxu0
          %v1578 = vadd.f32 %v1416, %v1577
          %v1579 = vpop.f32.mrb[0].mxu0
          %1580 = vmatprep.mubr.f32.mxu0 0.0
          %v1581 = vand.u32 %v511, 4294901760
          %1582 = vmatmul.mubr.f32.gmra.mrb[0].mxu0 %v1581
          %v1583 = vpop.f32.mrb[0].mxu0
          %v1584 = vadd.f32 %v1422, %v1583
          %v1585 = vpop.f32.mrb[0].mxu0
          %1586 = vmatprep.mubr.f32.mxu0 0.0
          %v1587 = vand.u32 %v514, 4294901760
          %1588 = vmatmul.mubr.f32.gmra.mrb[0].mxu0 %v1587
          %v1589 = vpop.f32.mrb[0].mxu0
          %v1590 = vadd.f32 %v1428, %v1589
          %v1591 = vpop.f32.mrb[0].mxu0
          %1592 = vmatprep.mubr.f32.mxu0 0.0
          %v1593 = vand.u32 %v517, 4294901760
          %1594 = vmatmul.mubr.f32.gmra.mrb[0].mxu0 %v1593
          %v1595 = vpop.f32.mrb[0].mxu0
          %v1596 = vadd.f32 %v1434, %v1595
          %v1597 = vpop.f32.mrb[0].mxu0
          %1598 = vmatprep.mubr.f32.mxu0 0.0
          %v1599 = vand.u32 %v520, 4294901760
          %1600 = vmatmul.mubr.f32.gmra.mrb[0].mxu0 %v1599
          %v1601 = vpop.f32.mrb[0].mxu0
          %v1602 = vadd.f32 %v1440, %v1601
          %v1603 = vpop.f32.mrb[0].mxu0
          %1604 = vmatprep.mubr.f32.mxu0 0.0
          %v1605 = vand.u32 %v523, 4294901760
          %1606 = vmatmul.mubr.f32.gmra.mrb[0].mxu0 %v1605
          %v1607 = vpop.f32.mrb[0].mxu0
          %v1608 = vadd.f32 %v1446, %v1607
          %v1609 = vpop.f32.mrb[0].mxu0
          %1610 = vmatprep.mubr.f32.mxu0 0.0
          %v1611 = vand.u32 %v526, 4294901760
          %1612 = vmatmul.mubr.f32.gmra.mrb[0].mxu0 %v1611
          %v1613 = vpop.f32.mrb[0].mxu0
          %v1614 = vadd.f32 %v1452, %v1613
          %v1615 = vpop.f32.mrb[0].mxu0
          %1616 = vmatprep.mubr.f32.mxu0 0.0
          %v1617 = vand.u32 %v529, 4294901760
          %1618 = vmatmul.mubr.f32.gmra.mrb[0].mxu0 %v1617
          %v1619 = vpop.f32.mrb[0].mxu0
          %v1620 = vadd.f32 %v1458, %v1619
          %v1621 = vpop.f32.mrb[0].mxu0
          %1622 = vmatprep.mubr.f32.mxu0 0.0
          %v1623 = vand.u32 %v532, 4294901760
          %1624 = vmatmul.mubr.f32.gmra.mrb[0].mxu0 %v1623
          %v1625 = vpop.f32.mrb[0].mxu0
          %v1626 = vadd.f32 %v1464, %v1625
          %v1627 = vpop.f32.mrb[0].mxu0
          %1628 = vdwg.mxu0
          %v1629 = vld [vmem:[%s354] sm:$0x1]
          %v1631 = vlaneseq
          %v1632 = vshrl.u32 %v1631, 7
          %v1633 = vsub.s32 0, %v1632
          %v1634 = vrot.slane %v1629, %v1633
          %v1636 = vadd.f32 %v1536, %v1634
          %v1637 = vadd.f32 %v1542, %v1634
          %v1638 = vadd.f32 %v1548, %v1634
          %v1639 = vadd.f32 %v1554, %v1634
          %v1640 = vadd.f32 %v1560, %v1634
          %v1641 = vadd.f32 %v1566, %v1634
          %v1642 = vadd.f32 %v1572, %v1634
          %v1643 = vadd.f32 %v1578, %v1634
          %v1644 = vadd.f32 %v1584, %v1634
          %v1645 = vadd.f32 %v1590, %v1634
          %v1646 = vadd.f32 %v1596, %v1634
          %v1647 = vadd.f32 %v1602, %v1634
          %v1648 = vadd.f32 %v1608, %v1634
          %v1649 = vadd.f32 %v1614, %v1634
          %v1650 = vadd.f32 %v1620, %v1634
          %v1651 = vadd.f32 %v1626, %v1634
          %s1652 = sld [smem:[#allocation6]]
          %v1653 = vstv %s1652
          %v1654 = vmin.f32 %v1636, %v1653
          %v1655 = vmin.f32 %v1637, %v1653
          %v1656 = vmin.f32 %v1638, %v1653
          %v1657 = vmin.f32 %v1639, %v1653
          %v1658 = vmin.f32 %v1640, %v1653
          %v1659 = vmin.f32 %v1641, %v1653
          %v1660 = vmin.f32 %v1642, %v1653
          %v1661 = vmin.f32 %v1643, %v1653
          %v1662 = vmin.f32 %v1644, %v1653
          %v1663 = vmin.f32 %v1645, %v1653
          %v1664 = vmin.f32 %v1646, %v1653
          %v1665 = vmin.f32 %v1647, %v1653
          %v1666 = vmin.f32 %v1648, %v1653
          %v1667 = vmin.f32 %v1649, %v1653
          %v1668 = vmin.f32 %v1650, %v1653
          %v1669 = vmin.f32 %v1651, %v1653
          %v1670 = vmul.f32 %v1654, 1.442695
          %v1671 = vpow.pop %v1670
          %v1672 = vmul.f32 %v1655, 1.442695
          %v1673 = vpow.pop %v1672
          %v1674 = vmul.f32 %v1656, 1.442695
          %v1675 = vpow.pop %v1674
          %v1676 = vmul.f32 %v1657, 1.442695
          %v1677 = vpow.pop %v1676
          %v1678 = vmul.f32 %v1658, 1.442695
          %v1679 = vpow.pop %v1678
          %v1680 = vmul.f32 %v1659, 1.442695
          %v1681 = vpow.pop %v1680
          %v1682 = vmul.f32 %v1660, 1.442695
          %v1683 = vpow.pop %v1682
          %v1684 = vmul.f32 %v1661, 1.442695
          %v1685 = vpow.pop %v1684
          %v1686 = vmul.f32 %v1662, 1.442695
          %v1687 = vpow.pop %v1686
          %v1688 = vmul.f32 %v1663, 1.442695
          %v1689 = vpow.pop %v1688
          %v1690 = vmul.f32 %v1664, 1.442695
          %v1691 = vpow.pop %v1690
          %v1692 = vmul.f32 %v1665, 1.442695
          %v1693 = vpow.pop %v1692
          %v1694 = vmul.f32 %v1666, 1.442695
          %v1695 = vpow.pop %v1694
          %v1696 = vmul.f32 %v1667, 1.442695
          %v1697 = vpow.pop %v1696
          %v1698 = vmul.f32 %v1668, 1.442695
          %v1699 = vpow.pop %v1698
          %v1700 = vmul.f32 %v1669, 1.442695
          %v1701 = vpow.pop %v1700
          %p1702 = scmp.eq.s32.totalorder %s366, %s367
          // Predicated region
          $region49: #{tpu_custom_call.1} parent=47 // pred_check
            %p1703 = pneg %p1702
          $region50: #{tpu_custom_call.1} parent=47 // pred_check_branch
            %1705 = sbr.rel (%p1703) target = $region52
          $region51: #{tpu_custom_call.1} parent=47 // pred_region
            %v1706 = vlaneseq
            %v1707 = vshrl.u32 %v1706, 7
            %v1708 = vadd.s32 %v1707, 8
            %v1709 = vadd.s32 %v1707, 16
            %v1710 = vadd.s32 %v1707, 24
            %v1711 = vadd.s32 %v1707, 32
            %v1712 = vadd.s32 %v1707, 40
            %v1713 = vadd.s32 %v1707, 48
            %v1714 = vadd.s32 %v1707, 56
            %v1715 = vadd.s32 %v1707, 64
            %v1716 = vadd.s32 %v1707, 72
            %v1717 = vadd.s32 %v1707, 80
            %v1718 = vadd.s32 %v1707, 88
            %v1719 = vadd.s32 %v1707, 96
            %v1720 = vadd.s32 %v1707, 104
            %v1721 = vadd.s32 %v1707, 112
            %v1722 = vadd.s32 %v1707, 120
            %v1723 = vlaneseq
            %v1724 = vand.u32 %v1723, 127
            %vm1725 = vcmp.eq.s32.totalorder %v1707, %v1724
            %vm1726 = vcmp.eq.s32.totalorder %v1708, %v1724
            %vm1727 = vcmp.eq.s32.totalorder %v1709, %v1724
            %vm1728 = vcmp.eq.s32.totalorder %v1710, %v1724
            %vm1729 = vcmp.eq.s32.totalorder %v1711, %v1724
            %vm1730 = vcmp.eq.s32.totalorder %v1712, %v1724
            %vm1731 = vcmp.eq.s32.totalorder %v1713, %v1724
            %vm1732 = vcmp.eq.s32.totalorder %v1714, %v1724
            %vm1733 = vcmp.eq.s32.totalorder %v1715, %v1724
            %vm1734 = vcmp.eq.s32.totalorder %v1716, %v1724
            %vm1735 = vcmp.eq.s32.totalorder %v1717, %v1724
            %vm1736 = vcmp.eq.s32.totalorder %v1718, %v1724
            %vm1737 = vcmp.eq.s32.totalorder %v1719, %v1724
            %vm1738 = vcmp.eq.s32.totalorder %v1720, %v1724
            %vm1739 = vcmp.eq.s32.totalorder %v1721, %v1724
            %vm1740 = vcmp.eq.s32.totalorder %v1722, %v1724
            %s1741 = sld [smem:[#allocation6 + $0x1]]
            %v1742 = vstv %s1741
            %v1743 = vsel %vm1725, %v1742, 0.0
            %v1744 = vsel %vm1726, %v1742, 0.0
            %v1745 = vsel %vm1727, %v1742, 0.0
            %v1746 = vsel %vm1728, %v1742, 0.0
            %v1747 = vsel %vm1729, %v1742, 0.0
            %v1748 = vsel %vm1730, %v1742, 0.0
            %v1749 = vsel %vm1731, %v1742, 0.0
            %v1750 = vsel %vm1732, %v1742, 0.0
            %v1751 = vsel %vm1733, %v1742, 0.0
            %v1752 = vsel %vm1734, %v1742, 0.0
            %v1753 = vsel %vm1735, %v1742, 0.0
            %v1754 = vsel %vm1736, %v1742, 0.0
            %v1755 = vsel %vm1737, %v1742, 0.0
            %v1756 = vsel %vm1738, %v1742, 0.0
            %v1757 = vsel %vm1739, %v1742, 0.0
            %v1758 = vsel %vm1740, %v1742, 0.0
            %v1759 = vadd.f32 %v1671, %v1743
            %v1760 = vadd.f32 %v1673, %v1744
            %v1761 = vadd.f32 %v1675, %v1745
            %v1762 = vadd.f32 %v1677, %v1746
            %v1763 = vadd.f32 %v1679, %v1747
            %v1764 = vadd.f32 %v1681, %v1748
            %v1765 = vadd.f32 %v1683, %v1749
            %v1766 = vadd.f32 %v1685, %v1750
            %v1767 = vadd.f32 %v1687, %v1751
            %v1768 = vadd.f32 %v1689, %v1752
            %v1769 = vadd.f32 %v1691, %v1753
            %v1770 = vadd.f32 %v1693, %v1754
            %v1771 = vadd.f32 %v1695, %v1755
            %v1772 = vadd.f32 %v1697, %v1756
            %v1773 = vadd.f32 %v1699, %v1757
            %v1774 = vadd.f32 %v1701, %v1758
            %1775 = vst [vmem:[%s328] sm:$0xff] %v1759
            %1776 = vst [vmem:[%s328 + $0x8] sm:$0xff] %v1760
            %1777 = vst [vmem:[%s328 + $0x10] sm:$0xff] %v1761
            %1778 = vst [vmem:[%s328 + $0x18] sm:$0xff] %v1762
            %1779 = vst [vmem:[%s328 + $0x20] sm:$0xff] %v1763
            %1780 = vst [vmem:[%s328 + $0x28] sm:$0xff] %v1764
            %1781 = vst [vmem:[%s328 + $0x30] sm:$0xff] %v1765
            %1782 = vst [vmem:[%s328 + $0x38] sm:$0xff] %v1766
            %1783 = vst [vmem:[%s328 + $0x40] sm:$0xff] %v1767
            %1784 = vst [vmem:[%s328 + $0x48] sm:$0xff] %v1768
            %1785 = vst [vmem:[%s328 + $0x50] sm:$0xff] %v1769
            %1786 = vst [vmem:[%s328 + $0x58] sm:$0xff] %v1770
            %1787 = vst [vmem:[%s328 + $0x60] sm:$0xff] %v1771
            %1788 = vst [vmem:[%s328 + $0x68] sm:$0xff] %v1772
            %1789 = vst [vmem:[%s328 + $0x70] sm:$0xff] %v1773
            %1790 = vst [vmem:[%s328 + $0x78] sm:$0xff] %v1774
          $region52: #{tpu_custom_call.1} parent=47 // pred_fallthru
            _
          %p1791 = scmp.ne.s32.totalorder %s366, %s367
          // Predicated region
          $region53: #{tpu_custom_call.1} parent=47 // pred_check
            %p1792 = pneg %p1791
          $region54: #{tpu_custom_call.1} parent=47 // pred_check_branch
            %1794 = sbr.rel (%p1792) target = $region56
          $region55: #{tpu_custom_call.1} parent=47 // pred_region
            %1795 = vst [vmem:[%s328] sm:$0xff] %v1671
            %1796 = vst [vmem:[%s328 + $0x8] sm:$0xff] %v1673
            %1797 = vst [vmem:[%s328 + $0x10] sm:$0xff] %v1675
            %1798 = vst [vmem:[%s328 + $0x18] sm:$0xff] %v1677
            %1799 = vst [vmem:[%s328 + $0x20] sm:$0xff] %v1679
            %1800 = vst [vmem:[%s328 + $0x28] sm:$0xff] %v1681
            %1801 = vst [vmem:[%s328 + $0x30] sm:$0xff] %v1683
            %1802 = vst [vmem:[%s328 + $0x38] sm:$0xff] %v1685
            %1803 = vst [vmem:[%s328 + $0x40] sm:$0xff] %v1687
            %1804 = vst [vmem:[%s328 + $0x48] sm:$0xff] %v1689
            %1805 = vst [vmem:[%s328 + $0x50] sm:$0xff] %v1691
            %1806 = vst [vmem:[%s328 + $0x58] sm:$0xff] %v1693
            %1807 = vst [vmem:[%s328 + $0x60] sm:$0xff] %v1695
            %1808 = vst [vmem:[%s328 + $0x68] sm:$0xff] %v1697
            %1809 = vst [vmem:[%s328 + $0x70] sm:$0xff] %v1699
            %1810 = vst [vmem:[%s328 + $0x78] sm:$0xff] %v1701
            %1811 = vst [vmem:[#allocation2] sm:$0xff] %v1671
            %1812 = vst [vmem:[#allocation2 + $0x8] sm:$0xff] %v1673
            %1813 = vst [vmem:[#allocation2 + $0x10] sm:$0xff] %v1675
            %1814 = vst [vmem:[#allocation2 + $0x18] sm:$0xff] %v1677
            %1815 = vst [vmem:[#allocation2 + $0x20] sm:$0xff] %v1679
            %1816 = vst [vmem:[#allocation2 + $0x28] sm:$0xff] %v1681
            %1817 = vst [vmem:[#allocation2 + $0x30] sm:$0xff] %v1683
            %1818 = vst [vmem:[#allocation2 + $0x38] sm:$0xff] %v1685
            %1819 = vst [vmem:[#allocation2 + $0x40] sm:$0xff] %v1687
            %1820 = vst [vmem:[#allocation2 + $0x48] sm:$0xff] %v1689
            %1821 = vst [vmem:[#allocation2 + $0x50] sm:$0xff] %v1691
            %1822 = vst [vmem:[#allocation2 + $0x58] sm:$0xff] %v1693
            %1823 = vst [vmem:[#allocation2 + $0x60] sm:$0xff] %v1695
            %1824 = vst [vmem:[#allocation2 + $0x68] sm:$0xff] %v1697
            %1825 = vst [vmem:[#allocation2 + $0x70] sm:$0xff] %v1699
            %1826 = vst [vmem:[#allocation2 + $0x78] sm:$0xff] %v1701
          $region56: #{tpu_custom_call.1} parent=47 // pred_fallthru
            _
        $region48: #{tpu_custom_call.1} parent=39 // pred_fallthru
          _
        %p1827 = scmp.eq.s32.totalorder %s29, 1
        %p1828 = scmp.ne.s32.totalorder %s366, %s367
        %p1829 = pnand %p1827, %p1828
        %p1830 = pneg %p1829
        // Predicated region
        $region57: #{tpu_custom_call.1} parent=39 // pred_check
          _
        $region58: #{tpu_custom_call.1} parent=39 // pred_check_branch
          %1832 = sbr.rel (%p1829) target = $region60
        $region59: #{tpu_custom_call.1} parent=39 // pred_region
          %v1833 = vld [vmem:[#allocation2] sm:$0xff]
          %v1834 = vld [vmem:[#allocation2 + $0x8] sm:$0xff]
          %v1835 = vld [vmem:[#allocation2 + $0x10] sm:$0xff]
          %v1836 = vld [vmem:[#allocation2 + $0x18] sm:$0xff]
          %v1837 = vld [vmem:[#allocation2 + $0x20] sm:$0xff]
          %v1838 = vld [vmem:[#allocation2 + $0x28] sm:$0xff]
          %v1839 = vld [vmem:[#allocation2 + $0x30] sm:$0xff]
          %v1840 = vld [vmem:[#allocation2 + $0x38] sm:$0xff]
          %v1841 = vld [vmem:[#allocation2 + $0x40] sm:$0xff]
          %v1842 = vld [vmem:[#allocation2 + $0x48] sm:$0xff]
          %v1843 = vld [vmem:[#allocation2 + $0x50] sm:$0xff]
          %v1844 = vld [vmem:[#allocation2 + $0x58] sm:$0xff]
          %v1845 = vld [vmem:[#allocation2 + $0x60] sm:$0xff]
          %v1846 = vld [vmem:[#allocation2 + $0x68] sm:$0xff]
          %v1847 = vld [vmem:[#allocation2 + $0x70] sm:$0xff]
          %v1848 = vld [vmem:[#allocation2 + $0x78] sm:$0xff]
          %1849 = vxpose.xlu0.b32.start [1/16] %v1833, 128
          %1850 = vxpose.xlu0.b32.cont [2/16] %v1834, 128
          %1851 = vxpose.xlu0.b32.cont [3/16] %v1835, 128
          %1852 = vxpose.xlu0.b32.cont [4/16] %v1836, 128
          %1853 = vxpose.xlu0.b32.cont [5/16] %v1837, 128
          %1854 = vxpose.xlu0.b32.cont [6/16] %v1838, 128
          %1855 = vxpose.xlu0.b32.cont [7/16] %v1839, 128
          %1856 = vxpose.xlu0.b32.cont [8/16] %v1840, 128
          %1857 = vxpose.xlu0.b32.cont [9/16] %v1841, 128
          %1858 = vxpose.xlu0.b32.cont [10/16] %v1842, 128
          %1859 = vxpose.xlu0.b32.cont [11/16] %v1843, 128
          %1860 = vxpose.xlu0.b32.cont [12/16] %v1844, 128
          %1861 = vxpose.xlu0.b32.cont [13/16] %v1845, 128
          %1862 = vxpose.xlu0.b32.cont [14/16] %v1846, 128
          %1863 = vxpose.xlu0.b32.cont [15/16] %v1847, 128
          %1864 = vxpose.xlu0.b32.end [16/16] %v1848, 128
          %v1865 = vpop.trf.xlu0
          %v1866 = vpop.trf.xlu0
          %v1867 = vpop.trf.xlu0
          %v1868 = vpop.trf.xlu0
          %v1869 = vpop.trf.xlu0
          %v1870 = vpop.trf.xlu0
          %v1871 = vpop.trf.xlu0
          %v1872 = vpop.trf.xlu0
          %v1873 = vpop.trf.xlu0
          %v1874 = vpop.trf.xlu0
          %v1875 = vpop.trf.xlu0
          %v1876 = vpop.trf.xlu0
          %v1877 = vpop.trf.xlu0
          %v1878 = vpop.trf.xlu0
          %v1879 = vpop.trf.xlu0
          %v1880 = vpop.trf.xlu0
          %1881 = vst [vmem:[%s328] sm:$0xff] %v1865
          %1882 = vst [vmem:[%s328 + $0x8] sm:$0xff] %v1866
          %1883 = vst [vmem:[%s328 + $0x10] sm:$0xff] %v1867
          %1884 = vst [vmem:[%s328 + $0x18] sm:$0xff] %v1868
          %1885 = vst [vmem:[%s328 + $0x20] sm:$0xff] %v1869
          %1886 = vst [vmem:[%s328 + $0x28] sm:$0xff] %v1870
          %1887 = vst [vmem:[%s328 + $0x30] sm:$0xff] %v1871
          %1888 = vst [vmem:[%s328 + $0x38] sm:$0xff] %v1872
          %1889 = vst [vmem:[%s328 + $0x40] sm:$0xff] %v1873
          %1890 = vst [vmem:[%s328 + $0x48] sm:$0xff] %v1874
          %1891 = vst [vmem:[%s328 + $0x50] sm:$0xff] %v1875
          %1892 = vst [vmem:[%s328 + $0x58] sm:$0xff] %v1876
          %1893 = vst [vmem:[%s328 + $0x60] sm:$0xff] %v1877
          %1894 = vst [vmem:[%s328 + $0x68] sm:$0xff] %v1878
          %1895 = vst [vmem:[%s328 + $0x70] sm:$0xff] %v1879
          %1896 = vst [vmem:[%s328 + $0x78] sm:$0xff] %v1880
        $region60: #{tpu_custom_call.1} parent=39 // pred_fallthru
          _
        %s1897 = sand.u32 %s197, 1
        %s1898 = scalar_lea.sflag [#allocation7], %s1897
        %s1899 = sand.u32 %s197, 1
        %s1900 = smul.addr %s1899, 128
        %s1901 = scalar_lea.vmem [#allocation9], %s1900
        // Predicated region
        $region61: #{tpu_custom_call.1} parent=39 // pred_check
          %p1902 = pneg %p207
        $region62: #{tpu_custom_call.1} parent=39 // pred_check_branch
          %1904 = sbr.rel (%p1902) target = $region64
        $region63: #{tpu_custom_call.1} parent=39 // pred_region
          %s1905 = sld [smem:[#allocation4 + %s28]]
          %s1906 = ssub.s32 1, %s29
          %s1907 = smul.u32 %s1905, %s1906
          %s1908 = sld [smem:[#allocation5 + %s28]]
          %s1909 = smul.u32 %s1908, %s29
          %s1910 = sadd.s32 %s1907, %s1909
          %s1911 = smul.u32 %s1908, %s1906
          %s1912 = smul.u32 %s1905, %s29
          %s1913 = sadd.s32 %s1911, %s1912
          %s1914 = smul.u32 16, %s1910
          %s1916 = ssub.s32 2048, 2048
          %1917 = vsyncadd %s1898, %s1916
          %s1918 = sadd.s32 %s1913, %s1914
          %s1919 = smul.addr %s1918, 128
          %s1920 = scalar_lea.hbm %s7, %s1919
          %s1921 = sshll.u32 %s1901, 4
          %s1922 = int_to_ptr.vmem [resolvable:$true] %s1921
          %1927 = dma.vmem_to_hbm [thread:$0]  %s1922, 2048, %s1920, %s1898, 128, 128, 8
        $region64: #{tpu_custom_call.1} parent=39 // pred_fallthru
          _
      $region40: #{tpu_custom_call.1} parent=5 // pred_fallthru
        _
      %p1928 = scmp.le.s32.totalorder 2, %s19
      // Predicated region
      $region65: #{tpu_custom_call.1} parent=5 // pred_check
        %p1929 = pneg %p1928
      $region66: #{tpu_custom_call.1} parent=5 // pred_check_branch
        %1931 = sbr.rel (%p1929) target = $region68
      $region67: #{tpu_custom_call.1} parent=5 // pred_region
        %s1932 = ssub.s32 %s19, 2
        // Predicated region
        $region69: #{tpu_custom_call.1} parent=67 // pred_check
          %p1933 = pneg %p213
        $region70: #{tpu_custom_call.1} parent=67 // pred_check_branch
          %1935 = sbr.rel (%p1933) target = $region72
        $region71: #{tpu_custom_call.1} parent=67 // pred_region
          %s1936 = sand.u32 %s198, 1
          %s1937 = scalar_lea.sflag [#allocation7], %s1936
          %s1938 = sand.u32 %s198, 1
          %s1939 = smul.addr %s1938, 128
          %s1940 = scalar_lea.vmem [#allocation9], %s1939
          %1941 = dma.done %s1937, 2048
        $region72: #{tpu_custom_call.1} parent=67 // pred_fallthru
          _
      $region68: #{tpu_custom_call.1} parent=5 // pred_fallthru
        _
    $region6: #{tpu_custom_call.1} parent=1 // loop_footer
      %s23 = sadd.s32 1, %s19
    $region7: #{tpu_custom_call.1} parent=1 // loop_footer_branch
      %18 = sbr.rel target = $region3
    $region8: #{tpu_custom_call.1} parent=1 // loop_exit
      _
    %1942 = vsyncpa [#allocation7], 1
    %s1943 = scalar_lea.sflag [#allocation7], 1
    %1944 = vsyncpa %s1943, 1
    %1945 = vsyncpa [#allocation8], 1
    %s1946 = scalar_lea.sflag [#allocation8], 1
    %1947 = vsyncpa %s1946, 1

</llo_original>
